<compile_context>
chip_gen: v5e
topology: v5e:2x2
jax: 0.10.0
libtpu: 0.0.40
codegen_flags: <defaults>
</compile_context>

<pallas_src>
import jax
import jax.numpy as jnp
from jax.experimental import pallas as pl
from jax.experimental.pallas import tpu as pltpu

SELU_ALPHA = 1.6732632423543772848170429916717
SELU_SCALE = 1.0507009873554804934193349852946


def _selu(x):
    # Branch-free SELU (f32; v5e VPU/EUP have no bf16).  min() clamps the exp
    # argument so the negative branch never overflows.
    return SELU_SCALE * (jnp.maximum(x, 0.0)
                         + SELU_ALPHA * (jnp.exp(jnp.minimum(x, 0.0)) - 1.0))


def _gbdt_fused_kernel(x_ref, w1_ref, b1_ref, w2_ref, b2_ref, w3_ref, b3_ref,
                       avg_ref, o_ref):
    # One batch tile; all E ensemble members fused into the lane dimension.
    # x may arrive as f32 or bf16 -- the astype is a no-op for bf16 inputs.
    x = x_ref[...].astype(jnp.bfloat16)                               # (tb, D_in)

    # Layer 1: (tb, D_in) @ (D_in, E*H) -- single MXU pass for all members.
    h1 = jnp.dot(x, w1_ref[...], preferred_element_type=jnp.float32)
    h1 = _selu(h1 + b1_ref[...]).astype(jnp.bfloat16)                 # (tb, E*H)

    # Layer 2: block-diagonal (E*H, E*H).
    h2 = jnp.dot(h1, w2_ref[...], preferred_element_type=jnp.float32)
    h2 = _selu(h2 + b2_ref[...]).astype(jnp.bfloat16)                 # (tb, E*H)

    # Layer 3 + sigmoid: block-diagonal (E*H, E*D_out).
    y = jnp.dot(h2, w3_ref[...], preferred_element_type=jnp.float32)
    y = jax.nn.sigmoid(y + b3_ref[...])                               # (tb, E*D_out) f32

    # Ensemble mean via a small bf16 matmul with the lane-padded (E*D_out, 128)
    # 1/E matrix -> one lane-dense f32 store.
    o_ref[...] = jnp.dot(y.astype(jnp.bfloat16), avg_ref[...],
                         preferred_element_type=jnp.float32)


def _block_diag(stacked):
    """(E, a, b) -> (E*a, E*b) block-diagonal (host-side, done once)."""
    E, a, b = stacked.shape
    out = jnp.zeros((E * a, E * b), stacked.dtype)
    for e in range(E):
        out = out.at[e * a:(e + 1) * a, e * b:(e + 1) * b].set(stacked[e])
    return out


def fuse_params(params, compute_dtype=jnp.bfloat16):
    """One-time re-layout of stacked per-member weights into MXU-shaped fused
    weights (concat W1, block-diag W2/W3) plus a lane-padded group-mean matrix."""
    w1, b1, w2, b2, w3, b3 = (params["w1"], params["b1"], params["w2"],
                              params["b2"], params["w3"], params["b3"])
    E, D_in, H = w1.shape
    D_out = w3.shape[-1]
    d_out_pad = -(-D_out // 128) * 128          # lane-dense output width (>=128)

    w1_cat = jnp.transpose(w1, (1, 0, 2)).reshape(D_in, E * H)
    w2_bd = _block_diag(w2)
    w3_bd = _block_diag(w3)

    # Group-mean matrix, zero-padded to a lane-dense column width so the final
    # store is a full `vst`, not a masked partial store.  Zero columns are
    # exact (sigmoid precedes this matmul); 1/E is exact in bf16 for
    # power-of-two E.
    avg = jnp.zeros((E * D_out, d_out_pad), jnp.float32)
    avg = avg.at[:, :D_out].set(
        jnp.tile(jnp.eye(D_out, dtype=jnp.float32), (E, 1)) / E)

    return {
        "w1": w1_cat.astype(compute_dtype),
        "b1": b1.reshape(1, E * H).astype(jnp.float32),
        "w2": w2_bd.astype(compute_dtype),
        "b2": b2.reshape(1, E * H).astype(jnp.float32),
        "w3": w3_bd.astype(compute_dtype),
        "b3": b3.reshape(1, E * D_out).astype(jnp.float32),
        "avg": avg.astype(compute_dtype),
        "dims": (E, D_in, H, D_out, d_out_pad),
    }


def neural_gbdt_forward(x, fused, *, batch_tile=None):
    """x: (B, D_in) f32 or bf16 (pass bf16 from the producer to halve the HBM
    read; do NOT add a separate wrapper-side cast).  Returns (B, D_out) f32."""
    E, D_in, H, D_out, d_out_pad = fused["dims"]
    EH, EDo = E * H, E * D_out
    B = x.shape[0]

    # Batch tile: default one full MXU row block (256 on v6e/v7x; multiple of
    # v5e's 128).  Non-divisible / small batches are zero-padded rather than
    # shrinking the tile; at B >= 2*tb the grid is >= 2 so v7x's two
    # TensorCores both get work on the "parallel" axis.
    tb = 256 if batch_tile is None else batch_tile
    grid_n = pl.cdiv(B, tb)
    b_pad = grid_n * tb
    if b_pad != B:
        x = jnp.pad(x, ((0, b_pad - B), (0, 0)))

    # VMEM guard: block-diag W2 is (E*H)^2 bf16 and every input is
    # double-buffered by the pipeline even with a constant index_map.  Past
    # roughly E*H ~ 2048 this blows v7x's 32 MiB scoped / 64 MiB physical
    # VMEM -- at that scale switch to stacked (E, H, H) weights with an
    # 'arbitrary' grid axis over E (or pipeline_mode=pl.Buffered(1) on the
    # constant-index weight specs + an explicit vmem_limit_bytes).
    fused_weight_bytes = 2 * (D_in * EH + EH * EH + EH * EDo + EDo * d_out_pad)
    assert 2 * fused_weight_bytes < 28 * 1024 * 1024, (
        "block-diagonal fused weights too large for VMEM; use stacked "
        "per-member weights with a grid axis over E instead")

    out = pl.pallas_call(
        _gbdt_fused_kernel,
        out_shape=jax.ShapeDtypeStruct((b_pad, d_out_pad), jnp.float32),
        grid_spec=pltpu.PrefetchScalarGridSpec(
            num_scalar_prefetch=0,
            grid=(grid_n,),
            in_specs=[
                pl.BlockSpec((tb, D_in), lambda i: (i, 0)),        # x batch tile
                pl.BlockSpec((D_in, EH), lambda i: (0, 0)),        # fused W1
                pl.BlockSpec((1, EH), lambda i: (0, 0)),           # fused b1
                pl.BlockSpec((EH, EH), lambda i: (0, 0)),          # block-diag W2
                pl.BlockSpec((1, EH), lambda i: (0, 0)),           # fused b2
                pl.BlockSpec((EH, EDo), lambda i: (0, 0)),         # block-diag W3
                pl.BlockSpec((1, EDo), lambda i: (0, 0)),          # fused b3
                pl.BlockSpec((EDo, d_out_pad), lambda i: (0, 0)),  # 1/E group-mean
            ],
            out_specs=pl.BlockSpec((tb, d_out_pad), lambda i: (i, 0)),
        ),
        compiler_params=pltpu.CompilerParams(
            dimension_semantics=("parallel",),
        ),
    )(x, fused["w1"], fused["b1"], fused["w2"], fused["b2"],
      fused["w3"], fused["b3"], fused["avg"])

    # Strip the batch padding and the lane padding (cols >= D_out are exact 0).
    return out[:B, :D_out]


def init_params(key, input_dim, output_dim, n_ensemble, hidden_dim):
    """Deterministic init (uniform, roughly PyTorch Linear style)."""
    ks = jax.random.split(key, 6)

    def unif(k, shape, fan_in):
        bound = 1.0 / jnp.sqrt(fan_in)
        return jax.random.uniform(k, shape, jnp.float32, -bound, bound)

    return {
        "w1": unif(ks[0], (n_ensemble, input_dim, hidden_dim), input_dim),
        "b1": unif(ks[1], (n_ensemble, 1, hidden_dim), input_dim),
        "w2": unif(ks[2], (n_ensemble, hidden_dim, hidden_dim), hidden_dim),
        "b2": unif(ks[3], (n_ensemble, 1, hidden_dim), hidden_dim),
        "w3": unif(ks[4], (n_ensemble, hidden_dim, output_dim), hidden_dim),
        "b3": unif(ks[5], (n_ensemble, 1, output_dim), hidden_dim),
    }


def reference_forward(x, params, compute_dtype=jnp.bfloat16):
    """Pure-JAX per-member reference (mirrors the ensemble-mean semantics).
    Matmul operands (and the pre-average sigmoid outputs) are rounded through
    compute_dtype exactly as the kernel does, so the comparison isolates the
    block-diagonal fusion and the averaging matmul."""
    def rnd(a):
        return a.astype(compute_dtype).astype(jnp.float32)

    E = params["w1"].shape[0]
    xb = rnd(x)
    outs = []
    for e in range(E):
        h1 = _selu(xb @ rnd(params["w1"][e]) + params["b1"][e])
        h2 = _selu(rnd(h1) @ rnd(params["w2"][e]) + params["b2"][e])
        y = jax.nn.sigmoid(rnd(h2) @ rnd(params["w3"][e]) + params["b3"][e])
        outs.append(rnd(y))
    return jnp.mean(jnp.stack(outs), axis=0)


if __name__ == "__main__":
    B, D_in, H, D_out, E = 8, 16, 32, 8, 4

    key = jax.random.PRNGKey(0)
    k_x, k_p = jax.random.split(key)
    x = jax.random.normal(k_x, (B, D_in), dtype=jnp.float32)
    params = init_params(k_p, D_in, D_out, E, H)
    fused = fuse_params(params)                     # one-time weight re-layout

    out = neural_gbdt_forward(x, fused)             # default 256-row batch tile
    out = jax.block_until_ready(out)

    ref = reference_forward(x, params)
    assert out.shape == (B, D_out)
    assert jnp.allclose(out, ref, atol=1e-3, rtol=1e-3), "mismatch vs reference"

    print("KERNEL_OK")
</pallas_src>

<mosaic_0001>
module attributes {stable_mosaic.version = 11 : i64} {
  func.func @_gbdt_fused_kernel(%arg0: i32, %arg1: memref<256x16xf32, #tpu.memory_space<vmem>>, %arg2: memref<16x128xbf16, #tpu.memory_space<vmem>>, %arg3: memref<1x128xf32, #tpu.memory_space<vmem>>, %arg4: memref<128x128xbf16, #tpu.memory_space<vmem>>, %arg5: memref<1x128xf32, #tpu.memory_space<vmem>>, %arg6: memref<128x32xbf16, #tpu.memory_space<vmem>>, %arg7: memref<1x32xf32, #tpu.memory_space<vmem>>, %arg8: memref<32x128xbf16, #tpu.memory_space<vmem>>, %arg9: memref<256x128xf32, #tpu.memory_space<vmem>>) attributes {dimension_semantics = [#tpu.dimension_semantics<parallel>], iteration_bounds = array<i64: 1>, scalar_prefetch = 0 : i64, scratch_operands = 0 : i64, tpu.core_type = #tpu.core_type<tc>, window_params = [{transform_indices = @transform_0, window_bounds = array<i64: 256, 16>}, {pipeline_mode = #tpu.pipeline_mode<synchronous>, transform_indices = @transform_1, window_bounds = array<i64: 16, 128>}, {pipeline_mode = #tpu.pipeline_mode<synchronous>, transform_indices = @transform_2, window_bounds = array<i64: 1, 128>}, {pipeline_mode = #tpu.pipeline_mode<synchronous>, transform_indices = @transform_3, window_bounds = array<i64: 128, 128>}, {pipeline_mode = #tpu.pipeline_mode<synchronous>, transform_indices = @transform_4, window_bounds = array<i64: 1, 128>}, {pipeline_mode = #tpu.pipeline_mode<synchronous>, transform_indices = @transform_5, window_bounds = array<i64: 128, 32>}, {pipeline_mode = #tpu.pipeline_mode<synchronous>, transform_indices = @transform_6, window_bounds = array<i64: 1, 32>}, {pipeline_mode = #tpu.pipeline_mode<synchronous>, transform_indices = @transform_7, window_bounds = array<i64: 32, 128>}, {transform_indices = @transform_8, window_bounds = array<i64: 256, 128>}]} {
    %c0 = arith.constant 0 : index
    %c0_0 = arith.constant 0 : index
    %0 = vector.load %arg1[%c0, %c0_0] : memref<256x16xf32, #tpu.memory_space<vmem>>, vector<256x16xf32>
    %1 = arith.truncf %0 : vector<256x16xf32> to vector<256x16xbf16>
    %c0_1 = arith.constant 0 : index
    %c0_2 = arith.constant 0 : index
    %2 = vector.load %arg2[%c0_1, %c0_2] : memref<16x128xbf16, #tpu.memory_space<vmem>>, vector<16x128xbf16>
    %cst = arith.constant dense<0.000000e+00> : vector<256x128xf32>
    %3 = tpu.matmul %1, %2, %cst {dimension_numbers = #tpu.dot_dimension_numbers<[1], [0], [0], [1], [0, 0, 1, 1], [], []>} : vector<256x16xbf16>, vector<16x128xbf16>, vector<256x128xf32> -> vector<256x128xf32>
    %c0_3 = arith.constant 0 : index
    %c0_4 = arith.constant 0 : index
    %4 = vector.load %arg3[%c0_3, %c0_4] : memref<1x128xf32, #tpu.memory_space<vmem>>, vector<1x128xf32>
    %5 = vector.broadcast %4 : vector<1x128xf32> to vector<256x128xf32>
    %6 = arith.addf %3, %5 : vector<256x128xf32>
    %cst_5 = arith.constant 0.000000e+00 : f32
    %7 = vector.broadcast %cst_5 : f32 to vector<256x128xf32>
    %8 = arith.maximumf %6, %7 : vector<256x128xf32>
    %cst_6 = arith.constant 0.000000e+00 : f32
    %9 = vector.broadcast %cst_6 : f32 to vector<256x128xf32>
    %10 = arith.minimumf %6, %9 : vector<256x128xf32>
    %11 = math.exp %10 : vector<256x128xf32>
    %cst_7 = arith.constant 1.000000e+00 : f32
    %12 = vector.broadcast %cst_7 : f32 to vector<256x128xf32>
    %13 = arith.subf %11, %12 : vector<256x128xf32>
    %cst_8 = arith.constant 1.67326319 : f32
    %14 = vector.broadcast %cst_8 : f32 to vector<256x128xf32>
    %15 = arith.mulf %14, %13 : vector<256x128xf32>
    %16 = arith.addf %8, %15 : vector<256x128xf32>
    %cst_9 = arith.constant 1.05070102 : f32
    %17 = vector.broadcast %cst_9 : f32 to vector<256x128xf32>
    %18 = arith.mulf %17, %16 : vector<256x128xf32>
    %19 = arith.truncf %18 : vector<256x128xf32> to vector<256x128xbf16>
    %c0_10 = arith.constant 0 : index
    %c0_11 = arith.constant 0 : index
    %20 = vector.load %arg4[%c0_10, %c0_11] : memref<128x128xbf16, #tpu.memory_space<vmem>>, vector<128x128xbf16>
    %cst_12 = arith.constant dense<0.000000e+00> : vector<256x128xf32>
    %21 = tpu.matmul %19, %20, %cst_12 {dimension_numbers = #tpu.dot_dimension_numbers<[1], [0], [0], [1], [0, 0, 1, 1], [], []>} : vector<256x128xbf16>, vector<128x128xbf16>, vector<256x128xf32> -> vector<256x128xf32>
    %c0_13 = arith.constant 0 : index
    %c0_14 = arith.constant 0 : index
    %22 = vector.load %arg5[%c0_13, %c0_14] : memref<1x128xf32, #tpu.memory_space<vmem>>, vector<1x128xf32>
    %23 = vector.broadcast %22 : vector<1x128xf32> to vector<256x128xf32>
    %24 = arith.addf %21, %23 : vector<256x128xf32>
    %cst_15 = arith.constant 0.000000e+00 : f32
    %25 = vector.broadcast %cst_15 : f32 to vector<256x128xf32>
    %26 = arith.maximumf %24, %25 : vector<256x128xf32>
    %cst_16 = arith.constant 0.000000e+00 : f32
    %27 = vector.broadcast %cst_16 : f32 to vector<256x128xf32>
    %28 = arith.minimumf %24, %27 : vector<256x128xf32>
    %29 = math.exp %28 : vector<256x128xf32>
    %cst_17 = arith.constant 1.000000e+00 : f32
    %30 = vector.broadcast %cst_17 : f32 to vector<256x128xf32>
    %31 = arith.subf %29, %30 : vector<256x128xf32>
    %cst_18 = arith.constant 1.67326319 : f32
    %32 = vector.broadcast %cst_18 : f32 to vector<256x128xf32>
    %33 = arith.mulf %32, %31 : vector<256x128xf32>
    %34 = arith.addf %26, %33 : vector<256x128xf32>
    %cst_19 = arith.constant 1.05070102 : f32
    %35 = vector.broadcast %cst_19 : f32 to vector<256x128xf32>
    %36 = arith.mulf %35, %34 : vector<256x128xf32>
    %37 = arith.truncf %36 : vector<256x128xf32> to vector<256x128xbf16>
    %c0_20 = arith.constant 0 : index
    %c0_21 = arith.constant 0 : index
    %38 = vector.load %arg6[%c0_20, %c0_21] : memref<128x32xbf16, #tpu.memory_space<vmem>>, vector<128x32xbf16>
    %cst_22 = arith.constant dense<0.000000e+00> : vector<256x32xf32>
    %39 = tpu.matmul %37, %38, %cst_22 {dimension_numbers = #tpu.dot_dimension_numbers<[1], [0], [0], [1], [0, 0, 1, 1], [], []>} : vector<256x128xbf16>, vector<128x32xbf16>, vector<256x32xf32> -> vector<256x32xf32>
    %c0_23 = arith.constant 0 : index
    %c0_24 = arith.constant 0 : index
    %40 = vector.load %arg7[%c0_23, %c0_24] : memref<1x32xf32, #tpu.memory_space<vmem>>, vector<1x32xf32>
    %41 = vector.broadcast %40 : vector<1x32xf32> to vector<256x32xf32>
    %42 = arith.addf %39, %41 : vector<256x32xf32>
    %43 = arith.negf %42 : vector<256x32xf32>
    %44 = math.exp %43 : vector<256x32xf32>
    %cst_25 = arith.constant 1.000000e+00 : f32
    %45 = vector.broadcast %cst_25 : f32 to vector<256x32xf32>
    %46 = arith.addf %45, %44 : vector<256x32xf32>
    %47 = arith.divf %45, %46 : vector<256x32xf32>
    %48 = arith.truncf %47 : vector<256x32xf32> to vector<256x32xbf16>
    %c0_26 = arith.constant 0 : index
    %c0_27 = arith.constant 0 : index
    %49 = vector.load %arg8[%c0_26, %c0_27] : memref<32x128xbf16, #tpu.memory_space<vmem>>, vector<32x128xbf16>
    %cst_28 = arith.constant dense<0.000000e+00> : vector<256x128xf32>
    %50 = tpu.matmul %48, %49, %cst_28 {dimension_numbers = #tpu.dot_dimension_numbers<[1], [0], [0], [1], [0, 0, 1, 1], [], []>} : vector<256x32xbf16>, vector<32x128xbf16>, vector<256x128xf32> -> vector<256x128xf32>
    %c0_29 = arith.constant 0 : index
    %c0_30 = arith.constant 0 : index
    %51 = vector.load %arg9[%c0_29, %c0_30] : memref<256x128xf32, #tpu.memory_space<vmem>>, vector<256x128xf32>
    tpu.vector_store %arg9[%c0_29, %c0_30], %50 {strides = array<i32>} : memref<256x128xf32, #tpu.memory_space<vmem>>, vector<256x128xf32>,
    return
  }
  func.func @transform_0(%arg0: i32) -> (i32, i32) {
    %c0_i32 = arith.constant 0 : i32
    %c0_i32_0 = arith.constant 0 : i32
    return %arg0, %c0_i32 : i32, i32
  }
  func.func @transform_1(%arg0: i32) -> (i32, i32) {
    %c0_i32 = arith.constant 0 : i32
    %c0_i32_0 = arith.constant 0 : i32
    %c0_i32_1 = arith.constant 0 : i32
    return %c0_i32, %c0_i32_0 : i32, i32
  }
  func.func @transform_2(%arg0: i32) -> (i32, i32) {
    %c0_i32 = arith.constant 0 : i32
    %c0_i32_0 = arith.constant 0 : i32
    %c0_i32_1 = arith.constant 0 : i32
    return %c0_i32, %c0_i32_0 : i32, i32
  }
  func.func @transform_3(%arg0: i32) -> (i32, i32) {
    %c0_i32 = arith.constant 0 : i32
    %c0_i32_0 = arith.constant 0 : i32
    %c0_i32_1 = arith.constant 0 : i32
    return %c0_i32, %c0_i32_0 : i32, i32
  }
  func.func @transform_4(%arg0: i32) -> (i32, i32) {
    %c0_i32 = arith.constant 0 : i32
    %c0_i32_0 = arith.constant 0 : i32
    %c0_i32_1 = arith.constant 0 : i32
    return %c0_i32, %c0_i32_0 : i32, i32
  }
  func.func @transform_5(%arg0: i32) -> (i32, i32) {
    %c0_i32 = arith.constant 0 : i32
    %c0_i32_0 = arith.constant 0 : i32
    %c0_i32_1 = arith.constant 0 : i32
    return %c0_i32, %c0_i32_0 : i32, i32
  }
  func.func @transform_6(%arg0: i32) -> (i32, i32) {
    %c0_i32 = arith.constant 0 : i32
    %c0_i32_0 = arith.constant 0 : i32
    %c0_i32_1 = arith.constant 0 : i32
    return %c0_i32, %c0_i32_0 : i32, i32
  }
  func.func @transform_7(%arg0: i32) -> (i32, i32) {
    %c0_i32 = arith.constant 0 : i32
    %c0_i32_0 = arith.constant 0 : i32
    %c0_i32_1 = arith.constant 0 : i32
    return %c0_i32, %c0_i32_0 : i32, i32
  }
  func.func @transform_8(%arg0: i32) -> (i32, i32) {
    %c0_i32 = arith.constant 0 : i32
    %c0_i32_0 = arith.constant 0 : i32
    return %arg0, %c0_i32 : i32, i32
  }
}

</mosaic_0001>

<llo_original>
// kernel: tpu_custom_call.1
$region0: #{tpu_custom_call.1}
  #allocation0 [shape = 'u32[]', space=smem, size = 0x4, offset = 0x4, fixed_abs, tag = 'smem constant byte address 0x4 - core index']
  #allocation1 [shape = 'u32[72,128]{1,0:T(1,128)}', space=vmem, size = 0x9000, scoped, tag = 'internal scratch']
  %s0 = inlined_call_operand.vmem [shape: f32[256,16], index: 0, kind: input, shape index: {}]
  %s1 = inlined_call_operand.vmem [shape: bf16[16,128], index: 1, kind: input, shape index: {}]
  %s2 = inlined_call_operand.vmem [shape: f32[1,128], index: 2, kind: input, shape index: {}]
  %s3 = inlined_call_operand.vmem [shape: bf16[128,128], index: 3, kind: input, shape index: {}]
  %s4 = inlined_call_operand.vmem [shape: f32[1,128], index: 4, kind: input, shape index: {}]
  %s5 = inlined_call_operand.vmem [shape: bf16[128,32], index: 5, kind: input, shape index: {}]
  %s6 = inlined_call_operand.vmem [shape: f32[1,32], index: 6, kind: input, shape index: {}]
  %s7 = inlined_call_operand.vmem [shape: bf16[32,128], index: 7, kind: input, shape index: {}]
  %s8 = inlined_call_operand.hbm [shape: f32[256,128], index: 8, kind: output, shape index: {}]
  %s9 = sld [smem:[#allocation0]]
  $region42: #{tpu_custom_call.1} parent=0
    _
  %s11 = ssub.s32 1, %s9
  %s12 = scalar_select 0, %s11, %s9
  $region1: #{tpu_custom_call.1} parent=0
    #allocation2 [shape = 'u8[131072]{0}', space=vmem, size = 0x20000, scoped, tag = 'output window, operand 0, single buffered']
    #allocation3 [shape = 's32[1]{0}', space=sflag, size = 0x4, scoped, tag = 'scoped memory for tpu_custom_call.1']
    %13 = vsyncpa [#allocation3], 0
    // Predicated region
    $region2: #{tpu_custom_call.1} parent=1 // pred_check
      _
    $region3: #{tpu_custom_call.1} parent=1 // pred_check_branch
      %15 = sbr.rel (0) target = $region5
    $region4: #{tpu_custom_call.1} parent=1 // pred_region
      _
    $region5: #{tpu_custom_call.1} parent=1 // pred_fallthru
      _
    // Predicated region
    $region6: #{tpu_custom_call.1} parent=1 // pred_check
      _
    $region7: #{tpu_custom_call.1} parent=1 // pred_check_branch
      %17 = sbr.rel (0) target = $region9
    $region8: #{tpu_custom_call.1} parent=1 // pred_region
      _
    $region9: #{tpu_custom_call.1} parent=1 // pred_fallthru
      _
    // Predicated region
    $region10: #{tpu_custom_call.1} parent=1 // pred_check
      _
    $region11: #{tpu_custom_call.1} parent=1 // pred_check_branch
      %19 = sbr.rel (0) target = $region13
    $region12: #{tpu_custom_call.1} parent=1 // pred_region
      _
    $region13: #{tpu_custom_call.1} parent=1 // pred_fallthru
      _
    // Predicated region
    $region14: #{tpu_custom_call.1} parent=1 // pred_check
      _
    $region15: #{tpu_custom_call.1} parent=1 // pred_check_branch
      %21 = sbr.rel (0) target = $region17
    $region16: #{tpu_custom_call.1} parent=1 // pred_region
      _
    $region17: #{tpu_custom_call.1} parent=1 // pred_fallthru
      _
    // Predicated region
    $region18: #{tpu_custom_call.1} parent=1 // pred_check
      _
    $region19: #{tpu_custom_call.1} parent=1 // pred_check_branch
      %23 = sbr.rel (0) target = $region21
    $region20: #{tpu_custom_call.1} parent=1 // pred_region
      _
    $region21: #{tpu_custom_call.1} parent=1 // pred_fallthru
      _
    // Predicated region
    $region22: #{tpu_custom_call.1} parent=1 // pred_check
      _
    $region23: #{tpu_custom_call.1} parent=1 // pred_check_branch
      %25 = sbr.rel (0) target = $region25
    $region24: #{tpu_custom_call.1} parent=1 // pred_region
      _
    $region25: #{tpu_custom_call.1} parent=1 // pred_fallthru
      _
    // Predicated region
    $region26: #{tpu_custom_call.1} parent=1 // pred_check
      _
    $region27: #{tpu_custom_call.1} parent=1 // pred_check_branch
      %27 = sbr.rel (0) target = $region29
    $region28: #{tpu_custom_call.1} parent=1 // pred_region
      _
    $region29: #{tpu_custom_call.1} parent=1 // pred_fallthru
      _
    // Predicated region
    $region30: #{tpu_custom_call.1} parent=1 // pred_check
      _
    $region31: #{tpu_custom_call.1} parent=1 // pred_check_branch
      %29 = sbr.rel (0) target = $region33
    $region32: #{tpu_custom_call.1} parent=1 // pred_region
      _
    $region33: #{tpu_custom_call.1} parent=1 // pred_fallthru
      _
    %v31 = vld [vmem:[%s0] sm:$0xff]
    %v32 = vld [vmem:[%s0 + $0x8] sm:$0xff]
    %v33 = vld [vmem:[%s0 + $0x10] sm:$0xff]
    %v34 = vld [vmem:[%s0 + $0x18] sm:$0xff]
    %v35 = vld [vmem:[%s0 + $0x20] sm:$0xff]
    %v36 = vld [vmem:[%s0 + $0x28] sm:$0xff]
    %v37 = vld [vmem:[%s0 + $0x30] sm:$0xff]
    %v38 = vld [vmem:[%s0 + $0x38] sm:$0xff]
    %v39 = vld [vmem:[%s0 + $0x40] sm:$0xff]
    %v40 = vld [vmem:[%s0 + $0x48] sm:$0xff]
    %v41 = vld [vmem:[%s0 + $0x50] sm:$0xff]
    %v42 = vld [vmem:[%s0 + $0x58] sm:$0xff]
    %v43 = vld [vmem:[%s0 + $0x60] sm:$0xff]
    %v44 = vld [vmem:[%s0 + $0x68] sm:$0xff]
    %v45 = vld [vmem:[%s0 + $0x70] sm:$0xff]
    %v46 = vld [vmem:[%s0 + $0x78] sm:$0xff]
    %v47 = vld [vmem:[%s0 + $0x80] sm:$0xff]
    %v48 = vld [vmem:[%s0 + $0x88] sm:$0xff]
    %v49 = vld [vmem:[%s0 + $0x90] sm:$0xff]
    %v50 = vld [vmem:[%s0 + $0x98] sm:$0xff]
    %v51 = vld [vmem:[%s0 + $0xa0] sm:$0xff]
    %v52 = vld [vmem:[%s0 + $0xa8] sm:$0xff]
    %v53 = vld [vmem:[%s0 + $0xb0] sm:$0xff]
    %v54 = vld [vmem:[%s0 + $0xb8] sm:$0xff]
    %v55 = vld [vmem:[%s0 + $0xc0] sm:$0xff]
    %v56 = vld [vmem:[%s0 + $0xc8] sm:$0xff]
    %v57 = vld [vmem:[%s0 + $0xd0] sm:$0xff]
    %v58 = vld [vmem:[%s0 + $0xd8] sm:$0xff]
    %v59 = vld [vmem:[%s0 + $0xe0] sm:$0xff]
    %v60 = vld [vmem:[%s0 + $0xe8] sm:$0xff]
    %v61 = vld [vmem:[%s0 + $0xf0] sm:$0xff]
    %v62 = vld [vmem:[%s0 + $0xf8] sm:$0xff]
    %v63 = vpack.c.bf16 %v32, %v31
    %v64 = vpack.c.bf16 %v34, %v33
    %v65 = vpack.c.bf16 %v36, %v35
    %v66 = vpack.c.bf16 %v38, %v37
    %v67 = vpack.c.bf16 %v40, %v39
    %v68 = vpack.c.bf16 %v42, %v41
    %v69 = vpack.c.bf16 %v44, %v43
    %v70 = vpack.c.bf16 %v46, %v45
    %v71 = vpack.c.bf16 %v48, %v47
    %v72 = vpack.c.bf16 %v50, %v49
    %v73 = vpack.c.bf16 %v52, %v51
    %v74 = vpack.c.bf16 %v54, %v53
    %v75 = vpack.c.bf16 %v56, %v55
    %v76 = vpack.c.bf16 %v58, %v57
    %v77 = vpack.c.bf16 %v60, %v59
    %v78 = vpack.c.bf16 %v62, %v61
    %v79 = vld [vmem:[%s1] sm:$0xf]
    %v80 = vld [vmem:[%s1 + $0x4] sm:$0xf]
    %v81 = vld [vmem:[%s2] sm:$0x1]
    %v83 = vperm.slane %v81, 0
    %v87 = vunpack.c.l.b16 %v79
    %v88 = vunpack.c.l.b16 %v80
    %v89 = vpack.c.b16 %v88, %v87
    %vm91 = vcmask 130048
    %v93 = vsel %vm91, %v63, 0
    %v96 = vsel %vm91, %v64, 0
    %v99 = vsel %vm91, %v65, 0
    %v102 = vsel %vm91, %v66, 0
    %v105 = vsel %vm91, %v67, 0
    %v108 = vsel %vm91, %v68, 0
    %v111 = vsel %vm91, %v69, 0
    %v114 = vsel %vm91, %v70, 0
    %v117 = vsel %vm91, %v71, 0
    %v120 = vsel %vm91, %v72, 0
    %v123 = vsel %vm91, %v73, 0
    %v126 = vsel %vm91, %v74, 0
    %v129 = vsel %vm91, %v75, 0
    %v132 = vsel %vm91, %v76, 0
    %v135 = vsel %vm91, %v77, 0
    %v138 = vsel %vm91, %v78, 0
    %140 = vmatpush.bf16.msra.mxu0 0
    %141 = vmatpush.bf16.msra.mxu0 0
    %142 = vmatpush.bf16.msra.mxu0 0
    %143 = vmatpush.bf16.msra.mxu0 0
    %144 = vmatpush.bf16.msra.mxu0 0
    %145 = vmatpush.bf16.msra.mxu0 0
    %146 = vmatpush.bf16.msra.mxu0 0
    %147 = vmatpush.bf16.msra.mxu0 %v89
    %148 = vmatmul.bf16.gmra.mxu0 %v93
    %v149 = vpop.f32.mrf.mxu0
    %v150 = vadd.f32 %v83, %v149
    %v151 = vpop.f32.mrf.mxu0
    %v152 = vadd.f32 %v83, %v151
    %153 = vmatmul.bf16.gmra.mxu0 %v96
    %v154 = vpop.f32.mrf.mxu0
    %v155 = vadd.f32 %v83, %v154
    %v156 = vpop.f32.mrf.mxu0
    %v157 = vadd.f32 %v83, %v156
    %158 = vmatmul.bf16.gmra.mxu0 %v99
    %v159 = vpop.f32.mrf.mxu0
    %v160 = vadd.f32 %v83, %v159
    %v161 = vpop.f32.mrf.mxu0
    %v162 = vadd.f32 %v83, %v161
    %163 = vmatmul.bf16.gmra.mxu0 %v102
    %v164 = vpop.f32.mrf.mxu0
    %v165 = vadd.f32 %v83, %v164
    %v166 = vpop.f32.mrf.mxu0
    %v167 = vadd.f32 %v83, %v166
    %168 = vmatmul.bf16.gmra.mxu0 %v105
    %v169 = vpop.f32.mrf.mxu0
    %v170 = vadd.f32 %v83, %v169
    %v171 = vpop.f32.mrf.mxu0
    %v172 = vadd.f32 %v83, %v171
    %173 = vmatmul.bf16.gmra.mxu0 %v108
    %v174 = vpop.f32.mrf.mxu0
    %v175 = vadd.f32 %v83, %v174
    %v176 = vpop.f32.mrf.mxu0
    %v177 = vadd.f32 %v83, %v176
    %178 = vmatmul.bf16.gmra.mxu0 %v111
    %v179 = vpop.f32.mrf.mxu0
    %v180 = vadd.f32 %v83, %v179
    %v181 = vpop.f32.mrf.mxu0
    %v182 = vadd.f32 %v83, %v181
    %183 = vmatmul.bf16.gmra.mxu0 %v114
    %v184 = vpop.f32.mrf.mxu0
    %v185 = vadd.f32 %v83, %v184
    %v186 = vpop.f32.mrf.mxu0
    %v187 = vadd.f32 %v83, %v186
    %188 = vmatmul.bf16.gmra.mxu0 %v117
    %v189 = vpop.f32.mrf.mxu0
    %v190 = vadd.f32 %v83, %v189
    %v191 = vpop.f32.mrf.mxu0
    %v192 = vadd.f32 %v83, %v191
    %193 = vmatmul.bf16.gmra.mxu0 %v120
    %v194 = vpop.f32.mrf.mxu0
    %v195 = vadd.f32 %v83, %v194
    %v196 = vpop.f32.mrf.mxu0
    %v197 = vadd.f32 %v83, %v196
    %198 = vmatmul.bf16.gmra.mxu0 %v123
    %v199 = vpop.f32.mrf.mxu0
    %v200 = vadd.f32 %v83, %v199
    %v201 = vpop.f32.mrf.mxu0
    %v202 = vadd.f32 %v83, %v201
    %203 = vmatmul.bf16.gmra.mxu0 %v126
    %v204 = vpop.f32.mrf.mxu0
    %v205 = vadd.f32 %v83, %v204
    %v206 = vpop.f32.mrf.mxu0
    %v207 = vadd.f32 %v83, %v206
    %208 = vmatmul.bf16.gmra.mxu0 %v129
    %v209 = vpop.f32.mrf.mxu0
    %v210 = vadd.f32 %v83, %v209
    %v211 = vpop.f32.mrf.mxu0
    %v212 = vadd.f32 %v83, %v211
    %213 = vmatmul.bf16.gmra.mxu0 %v132
    %v214 = vpop.f32.mrf.mxu0
    %v215 = vadd.f32 %v83, %v214
    %v216 = vpop.f32.mrf.mxu0
    %v217 = vadd.f32 %v83, %v216
    %218 = vmatmul.bf16.gmra.mxu0 %v135
    %v219 = vpop.f32.mrf.mxu0
    %v220 = vadd.f32 %v83, %v219
    %v221 = vpop.f32.mrf.mxu0
    %v222 = vadd.f32 %v83, %v221
    %223 = vmatmul.bf16.gmra.mxu0 %v138
    %v224 = vpop.f32.mrf.mxu0
    %v225 = vadd.f32 %v83, %v224
    %v226 = vpop.f32.mrf.mxu0
    %v227 = vadd.f32 %v83, %v226
    %228 = vdwg.mxu0
    %v229 = vmax.f32 %v150, 0.0
    %v230 = vmax.f32 %v152, 0.0
    %v231 = vmax.f32 %v155, 0.0
    %v232 = vmax.f32 %v157, 0.0
    %v233 = vmax.f32 %v160, 0.0
    %v234 = vmax.f32 %v162, 0.0
    %v235 = vmax.f32 %v165, 0.0
    %v236 = vmax.f32 %v167, 0.0
    %v237 = vmax.f32 %v170, 0.0
    %v238 = vmax.f32 %v172, 0.0
    %v239 = vmax.f32 %v175, 0.0
    %v240 = vmax.f32 %v177, 0.0
    %v241 = vmax.f32 %v180, 0.0
    %v242 = vmax.f32 %v182, 0.0
    %v243 = vmax.f32 %v185, 0.0
    %v244 = vmax.f32 %v187, 0.0
    %v245 = vmax.f32 %v190, 0.0
    %v246 = vmax.f32 %v192, 0.0
    %v247 = vmax.f32 %v195, 0.0
    %v248 = vmax.f32 %v197, 0.0
    %v249 = vmax.f32 %v200, 0.0
    %v250 = vmax.f32 %v202, 0.0
    %v251 = vmax.f32 %v205, 0.0
    %v252 = vmax.f32 %v207, 0.0
    %v253 = vmax.f32 %v210, 0.0
    %v254 = vmax.f32 %v212, 0.0
    %v255 = vmax.f32 %v215, 0.0
    %v256 = vmax.f32 %v217, 0.0
    %v257 = vmax.f32 %v220, 0.0
    %v258 = vmax.f32 %v222, 0.0
    %v259 = vmax.f32 %v225, 0.0
    %v260 = vmax.f32 %v227, 0.0
    %v261 = vmin.f32 %v150, 0.0
    %v262 = vmin.f32 %v152, 0.0
    %v263 = vmin.f32 %v155, 0.0
    %v264 = vmin.f32 %v157, 0.0
    %v265 = vmin.f32 %v160, 0.0
    %v266 = vmin.f32 %v162, 0.0
    %v267 = vmin.f32 %v165, 0.0
    %v268 = vmin.f32 %v167, 0.0
    %v269 = vmin.f32 %v170, 0.0
    %v270 = vmin.f32 %v172, 0.0
    %v271 = vmin.f32 %v175, 0.0
    %v272 = vmin.f32 %v177, 0.0
    %v273 = vmin.f32 %v180, 0.0
    %v274 = vmin.f32 %v182, 0.0
    %v275 = vmin.f32 %v185, 0.0
    %v276 = vmin.f32 %v187, 0.0
    %v277 = vmin.f32 %v190, 0.0
    %v278 = vmin.f32 %v192, 0.0
    %v279 = vmin.f32 %v195, 0.0
    %v280 = vmin.f32 %v197, 0.0
    %v281 = vmin.f32 %v200, 0.0
    %v282 = vmin.f32 %v202, 0.0
    %v283 = vmin.f32 %v205, 0.0
    %v284 = vmin.f32 %v207, 0.0
    %v285 = vmin.f32 %v210, 0.0
    %v286 = vmin.f32 %v212, 0.0
    %v287 = vmin.f32 %v215, 0.0
    %v288 = vmin.f32 %v217, 0.0
    %v289 = vmin.f32 %v220, 0.0
    %v290 = vmin.f32 %v222, 0.0
    %v291 = vmin.f32 %v225, 0.0
    %v292 = vmin.f32 %v227, 0.0
    %v293 = vmul.f32 %v261, 1.442695
    %v294 = vpow.pop %v293
    %v295 = vmul.f32 %v262, 1.442695
    %v296 = vpow.pop %v295
    %v297 = vmul.f32 %v263, 1.442695
    %v298 = vpow.pop %v297
    %v299 = vmul.f32 %v264, 1.442695
    %v300 = vpow.pop %v299
    %v301 = vmul.f32 %v265, 1.442695
    %v302 = vpow.pop %v301
    %v303 = vmul.f32 %v266, 1.442695
    %v304 = vpow.pop %v303
    %v305 = vmul.f32 %v267, 1.442695
    %v306 = vpow.pop %v305
    %v307 = vmul.f32 %v268, 1.442695
    %v308 = vpow.pop %v307
    %v309 = vmul.f32 %v269, 1.442695
    %v310 = vpow.pop %v309
    %v311 = vmul.f32 %v270, 1.442695
    %v312 = vpow.pop %v311
    %v313 = vmul.f32 %v271, 1.442695
    %v314 = vpow.pop %v313
    %v315 = vmul.f32 %v272, 1.442695
    %v316 = vpow.pop %v315
    %v317 = vmul.f32 %v273, 1.442695
    %v318 = vpow.pop %v317
    %v319 = vmul.f32 %v274, 1.442695
    %v320 = vpow.pop %v319
    %v321 = vmul.f32 %v275, 1.442695
    %v322 = vpow.pop %v321
    %v323 = vmul.f32 %v276, 1.442695
    %v324 = vpow.pop %v323
    %v325 = vmul.f32 %v277, 1.442695
    %v326 = vpow.pop %v325
    %v327 = vmul.f32 %v278, 1.442695
    %v328 = vpow.pop %v327
    %v329 = vmul.f32 %v279, 1.442695
    %v330 = vpow.pop %v329
    %v331 = vmul.f32 %v280, 1.442695
    %v332 = vpow.pop %v331
    %v333 = vmul.f32 %v281, 1.442695
    %v334 = vpow.pop %v333
    %v335 = vmul.f32 %v282, 1.442695
    %v336 = vpow.pop %v335
    %v337 = vmul.f32 %v283, 1.442695
    %v338 = vpow.pop %v337
    %v339 = vmul.f32 %v284, 1.442695
    %v340 = vpow.pop %v339
    %v341 = vmul.f32 %v285, 1.442695
    %v342 = vpow.pop %v341
    %v343 = vmul.f32 %v286, 1.442695
    %v344 = vpow.pop %v343
    %v345 = vmul.f32 %v287, 1.442695
    %v346 = vpow.pop %v345
    %v347 = vmul.f32 %v288, 1.442695
    %v348 = vpow.pop %v347
    %v349 = vmul.f32 %v289, 1.442695
    %v350 = vpow.pop %v349
    %v351 = vmul.f32 %v290, 1.442695
    %v352 = vpow.pop %v351
    %v353 = vmul.f32 %v291, 1.442695
    %v354 = vpow.pop %v353
    %v355 = vmul.f32 %v292, 1.442695
    %v356 = vpow.pop %v355
    %v357 = vsub.f32 %v294, 1.0
    %v358 = vsub.f32 %v296, 1.0
    %v359 = vsub.f32 %v298, 1.0
    %v360 = vsub.f32 %v300, 1.0
    %v361 = vsub.f32 %v302, 1.0
    %v362 = vsub.f32 %v304, 1.0
    %v363 = vsub.f32 %v306, 1.0
    %v364 = vsub.f32 %v308, 1.0
    %v365 = vsub.f32 %v310, 1.0
    %v366 = vsub.f32 %v312, 1.0
    %v367 = vsub.f32 %v314, 1.0
    %v368 = vsub.f32 %v316, 1.0
    %v369 = vsub.f32 %v318, 1.0
    %v370 = vsub.f32 %v320, 1.0
    %v371 = vsub.f32 %v322, 1.0
    %v372 = vsub.f32 %v324, 1.0
    %v373 = vsub.f32 %v326, 1.0
    %v374 = vsub.f32 %v328, 1.0
    %v375 = vsub.f32 %v330, 1.0
    %v376 = vsub.f32 %v332, 1.0
    %v377 = vsub.f32 %v334, 1.0
    %v378 = vsub.f32 %v336, 1.0
    %v379 = vsub.f32 %v338, 1.0
    %v380 = vsub.f32 %v340, 1.0
    %v381 = vsub.f32 %v342, 1.0
    %v382 = vsub.f32 %v344, 1.0
    %v383 = vsub.f32 %v346, 1.0
    %v384 = vsub.f32 %v348, 1.0
    %v385 = vsub.f32 %v350, 1.0
    %v386 = vsub.f32 %v352, 1.0
    %v387 = vsub.f32 %v354, 1.0
    %v388 = vsub.f32 %v356, 1.0
    %v389 = vmul.f32 %v357, 1.6732632
    %v390 = vmul.f32 %v358, 1.6732632
    %v391 = vmul.f32 %v359, 1.6732632
    %v392 = vmul.f32 %v360, 1.6732632
    %v393 = vmul.f32 %v361, 1.6732632
    %v394 = vmul.f32 %v362, 1.6732632
    %v395 = vmul.f32 %v363, 1.6732632
    %v396 = vmul.f32 %v364, 1.6732632
    %v397 = vmul.f32 %v365, 1.6732632
    %v398 = vmul.f32 %v366, 1.6732632
    %v399 = vmul.f32 %v367, 1.6732632
    %v400 = vmul.f32 %v368, 1.6732632
    %v401 = vmul.f32 %v369, 1.6732632
    %v402 = vmul.f32 %v370, 1.6732632
    %v403 = vmul.f32 %v371, 1.6732632
    %v404 = vmul.f32 %v372, 1.6732632
    %v405 = vmul.f32 %v373, 1.6732632
    %v406 = vmul.f32 %v374, 1.6732632
    %v407 = vmul.f32 %v375, 1.6732632
    %v408 = vmul.f32 %v376, 1.6732632
    %v409 = vmul.f32 %v377, 1.6732632
    %v410 = vmul.f32 %v378, 1.6732632
    %v411 = vmul.f32 %v379, 1.6732632
    %v412 = vmul.f32 %v380, 1.6732632
    %v413 = vmul.f32 %v381, 1.6732632
    %v414 = vmul.f32 %v382, 1.6732632
    %v415 = vmul.f32 %v383, 1.6732632
    %v416 = vmul.f32 %v384, 1.6732632
    %v417 = vmul.f32 %v385, 1.6732632
    %v418 = vmul.f32 %v386, 1.6732632
    %v419 = vmul.f32 %v387, 1.6732632
    %v420 = vmul.f32 %v388, 1.6732632
    %v421 = vadd.f32 %v229, %v389
    %v422 = vadd.f32 %v230, %v390
    %v423 = vadd.f32 %v231, %v391
    %v424 = vadd.f32 %v232, %v392
    %v425 = vadd.f32 %v233, %v393
    %v426 = vadd.f32 %v234, %v394
    %v427 = vadd.f32 %v235, %v395
    %v428 = vadd.f32 %v236, %v396
    %v429 = vadd.f32 %v237, %v397
    %v430 = vadd.f32 %v238, %v398
    %v431 = vadd.f32 %v239, %v399
    %v432 = vadd.f32 %v240, %v400
    %v433 = vadd.f32 %v241, %v401
    %v434 = vadd.f32 %v242, %v402
    %v435 = vadd.f32 %v243, %v403
    %v436 = vadd.f32 %v244, %v404
    %v437 = vadd.f32 %v245, %v405
    %v438 = vadd.f32 %v246, %v406
    %v439 = vadd.f32 %v247, %v407
    %v440 = vadd.f32 %v248, %v408
    %v441 = vadd.f32 %v249, %v409
    %v442 = vadd.f32 %v250, %v410
    %v443 = vadd.f32 %v251, %v411
    %v444 = vadd.f32 %v252, %v412
    %v445 = vadd.f32 %v253, %v413
    %v446 = vadd.f32 %v254, %v414
    %v447 = vadd.f32 %v255, %v415
    %v448 = vadd.f32 %v256, %v416
    %v449 = vadd.f32 %v257, %v417
    %v450 = vadd.f32 %v258, %v418
    %v451 = vadd.f32 %v259, %v419
    %v452 = vadd.f32 %v260, %v420
    %v453 = vmul.f32 %v421, 1.050701
    %v454 = vmul.f32 %v422, 1.050701
    %v455 = vmul.f32 %v423, 1.050701
    %v456 = vmul.f32 %v424, 1.050701
    %v457 = vmul.f32 %v425, 1.050701
    %v458 = vmul.f32 %v426, 1.050701
    %v459 = vmul.f32 %v427, 1.050701
    %v460 = vmul.f32 %v428, 1.050701
    %v461 = vmul.f32 %v429, 1.050701
    %v462 = vmul.f32 %v430, 1.050701
    %v463 = vmul.f32 %v431, 1.050701
    %v464 = vmul.f32 %v432, 1.050701
    %v465 = vmul.f32 %v433, 1.050701
    %v466 = vmul.f32 %v434, 1.050701
    %v467 = vmul.f32 %v435, 1.050701
    %v468 = vmul.f32 %v436, 1.050701
    %v469 = vmul.f32 %v437, 1.050701
    %v470 = vmul.f32 %v438, 1.050701
    %v471 = vmul.f32 %v439, 1.050701
    %v472 = vmul.f32 %v440, 1.050701
    %v473 = vmul.f32 %v441, 1.050701
    %v474 = vmul.f32 %v442, 1.050701
    %v475 = vmul.f32 %v443, 1.050701
    %v476 = vmul.f32 %v444, 1.050701
    %v477 = vmul.f32 %v445, 1.050701
    %v478 = vmul.f32 %v446, 1.050701
    %v479 = vmul.f32 %v447, 1.050701
    %v480 = vmul.f32 %v448, 1.050701
    %v481 = vmul.f32 %v449, 1.050701
    %v482 = vmul.f32 %v450, 1.050701
    %v483 = vmul.f32 %v451, 1.050701
    %v484 = vmul.f32 %v452, 1.050701
    %v485 = vpack.c.bf16 %v454, %v453
    %v486 = vpack.c.bf16 %v456, %v455
    %v487 = vpack.c.bf16 %v458, %v457
    %v488 = vpack.c.bf16 %v460, %v459
    %v489 = vpack.c.bf16 %v462, %v461
    %v490 = vpack.c.bf16 %v464, %v463
    %v491 = vpack.c.bf16 %v466, %v465
    %v492 = vpack.c.bf16 %v468, %v467
    %v493 = vpack.c.bf16 %v470, %v469
    %v494 = vpack.c.bf16 %v472, %v471
    %v495 = vpack.c.bf16 %v474, %v473
    %v496 = vpack.c.bf16 %v476, %v475
    %v497 = vpack.c.bf16 %v478, %v477
    %v498 = vpack.c.bf16 %v480, %v479
    %v499 = vpack.c.bf16 %v482, %v481
    %v500 = vpack.c.bf16 %v484, %v483
    %v501 = vld [vmem:[%s3] sm:$0xf]
    %v502 = vld [vmem:[%s3 + $0x4] sm:$0xf]
    %v503 = vld [vmem:[%s3 + $0x8] sm:$0xf]
    %v504 = vld [vmem:[%s3 + $0xc] sm:$0xf]
    %v505 = vld [vmem:[%s3 + $0x10] sm:$0xf]
    %v506 = vld [vmem:[%s3 + $0x14] sm:$0xf]
    %v507 = vld [vmem:[%s3 + $0x18] sm:$0xf]
    %v508 = vld [vmem:[%s3 + $0x1c] sm:$0xf]
    %v509 = vld [vmem:[%s3 + $0x20] sm:$0xf]
    %v510 = vld [vmem:[%s3 + $0x24] sm:$0xf]
    %v511 = vld [vmem:[%s3 + $0x28] sm:$0xf]
    %v512 = vld [vmem:[%s3 + $0x2c] sm:$0xf]
    %v513 = vld [vmem:[%s3 + $0x30] sm:$0xf]
    %v514 = vld [vmem:[%s3 + $0x34] sm:$0xf]
    %v515 = vld [vmem:[%s3 + $0x38] sm:$0xf]
    %v516 = vld [vmem:[%s3 + $0x3c] sm:$0xf]
    %v517 = vld [vmem:[%s4] sm:$0x1]
    %v519 = vperm.slane %v517, 0
    %v537 = vunpack.c.l.b16 %v501
    %v538 = vunpack.c.l.b16 %v502
    %v539 = vunpack.c.l.b16 %v503
    %v540 = vunpack.c.l.b16 %v504
    %v541 = vunpack.c.l.b16 %v505
    %v542 = vunpack.c.l.b16 %v506
    %v543 = vunpack.c.l.b16 %v507
    %v544 = vunpack.c.l.b16 %v508
    %v545 = vunpack.c.l.b16 %v509
    %v546 = vunpack.c.l.b16 %v510
    %v547 = vunpack.c.l.b16 %v511
    %v548 = vunpack.c.l.b16 %v512
    %v549 = vunpack.c.l.b16 %v513
    %v550 = vunpack.c.l.b16 %v514
    %v551 = vunpack.c.l.b16 %v515
    %v552 = vunpack.c.l.b16 %v516
    %v553 = vpack.c.b16 %v538, %v537
    %v554 = vpack.c.b16 %v540, %v539
    %v555 = vpack.c.b16 %v542, %v541
    %v556 = vpack.c.b16 %v544, %v543
    %v557 = vpack.c.b16 %v546, %v545
    %v558 = vpack.c.b16 %v548, %v547
    %v559 = vpack.c.b16 %v550, %v549
    %v560 = vpack.c.b16 %v552, %v551
    %569 = vmatpush.bf16.msra.mxu0 %v560
    %570 = vmatpush.bf16.msra.mxu0 %v559
    %571 = vmatpush.bf16.msra.mxu0 %v558
    %572 = vmatpush.bf16.msra.mxu0 %v557
    %573 = vmatpush.bf16.msra.mxu0 %v556
    %574 = vmatpush.bf16.msra.mxu0 %v555
    %575 = vmatpush.bf16.msra.mxu0 %v554
    %576 = vmatpush.bf16.msra.mxu0 %v553
    %577 = vmatmul.bf16.gmra.mxu0 %v485
    %v578 = vpop.f32.mrf.mxu0
    %v579 = vadd.f32 %v519, %v578
    %v580 = vpop.f32.mrf.mxu0
    %v581 = vadd.f32 %v519, %v580
    %582 = vmatmul.bf16.gmra.mxu0 %v486
    %v583 = vpop.f32.mrf.mxu0
    %v584 = vadd.f32 %v519, %v583
    %v585 = vpop.f32.mrf.mxu0
    %v586 = vadd.f32 %v519, %v585
    %587 = vmatmul.bf16.gmra.mxu0 %v487
    %v588 = vpop.f32.mrf.mxu0
    %v589 = vadd.f32 %v519, %v588
    %v590 = vpop.f32.mrf.mxu0
    %v591 = vadd.f32 %v519, %v590
    %592 = vmatmul.bf16.gmra.mxu0 %v488
    %v593 = vpop.f32.mrf.mxu0
    %v594 = vadd.f32 %v519, %v593
    %v595 = vpop.f32.mrf.mxu0
    %v596 = vadd.f32 %v519, %v595
    %597 = vmatmul.bf16.gmra.mxu0 %v489
    %v598 = vpop.f32.mrf.mxu0
    %v599 = vadd.f32 %v519, %v598
    %v600 = vpop.f32.mrf.mxu0
    %v601 = vadd.f32 %v519, %v600
    %602 = vmatmul.bf16.gmra.mxu0 %v490
    %v603 = vpop.f32.mrf.mxu0
    %v604 = vadd.f32 %v519, %v603
    %v605 = vpop.f32.mrf.mxu0
    %v606 = vadd.f32 %v519, %v605
    %607 = vmatmul.bf16.gmra.mxu0 %v491
    %v608 = vpop.f32.mrf.mxu0
    %v609 = vadd.f32 %v519, %v608
    %v610 = vpop.f32.mrf.mxu0
    %v611 = vadd.f32 %v519, %v610
    %612 = vmatmul.bf16.gmra.mxu0 %v492
    %v613 = vpop.f32.mrf.mxu0
    %v614 = vadd.f32 %v519, %v613
    %v615 = vpop.f32.mrf.mxu0
    %v616 = vadd.f32 %v519, %v615
    %617 = vmatmul.bf16.gmra.mxu0 %v493
    %v618 = vpop.f32.mrf.mxu0
    %v619 = vadd.f32 %v519, %v618
    %v620 = vpop.f32.mrf.mxu0
    %v621 = vadd.f32 %v519, %v620
    %622 = vmatmul.bf16.gmra.mxu0 %v494
    %v623 = vpop.f32.mrf.mxu0
    %v624 = vadd.f32 %v519, %v623
    %v625 = vpop.f32.mrf.mxu0
    %v626 = vadd.f32 %v519, %v625
    %627 = vmatmul.bf16.gmra.mxu0 %v495
    %v628 = vpop.f32.mrf.mxu0
    %v629 = vadd.f32 %v519, %v628
    %v630 = vpop.f32.mrf.mxu0
    %v631 = vadd.f32 %v519, %v630
    %632 = vmatmul.bf16.gmra.mxu0 %v496
    %v633 = vpop.f32.mrf.mxu0
    %v634 = vadd.f32 %v519, %v633
    %v635 = vpop.f32.mrf.mxu0
    %v636 = vadd.f32 %v519, %v635
    %637 = vmatmul.bf16.gmra.mxu0 %v497
    %v638 = vpop.f32.mrf.mxu0
    %v639 = vadd.f32 %v519, %v638
    %v640 = vpop.f32.mrf.mxu0
    %v641 = vadd.f32 %v519, %v640
    %642 = vmatmul.bf16.gmra.mxu0 %v498
    %v643 = vpop.f32.mrf.mxu0
    %v644 = vadd.f32 %v519, %v643
    %v645 = vpop.f32.mrf.mxu0
    %v646 = vadd.f32 %v519, %v645
    %647 = vmatmul.bf16.gmra.mxu0 %v499
    %v648 = vpop.f32.mrf.mxu0
    %v649 = vadd.f32 %v519, %v648
    %v650 = vpop.f32.mrf.mxu0
    %v651 = vadd.f32 %v519, %v650
    %652 = vmatmul.bf16.gmra.mxu0 %v500
    %v653 = vpop.f32.mrf.mxu0
    %v654 = vadd.f32 %v519, %v653
    %v655 = vpop.f32.mrf.mxu0
    %v656 = vadd.f32 %v519, %v655
    %657 = vdwg.mxu0
    %v658 = vmax.f32 %v579, 0.0
    %v659 = vmax.f32 %v581, 0.0
    %v660 = vmax.f32 %v584, 0.0
    %v661 = vmax.f32 %v586, 0.0
    %v662 = vmax.f32 %v589, 0.0
    %v663 = vmax.f32 %v591, 0.0
    %v664 = vmax.f32 %v594, 0.0
    %v665 = vmax.f32 %v596, 0.0
    %v666 = vmax.f32 %v599, 0.0
    %v667 = vmax.f32 %v601, 0.0
    %v668 = vmax.f32 %v604, 0.0
    %v669 = vmax.f32 %v606, 0.0
    %v670 = vmax.f32 %v609, 0.0
    %v671 = vmax.f32 %v611, 0.0
    %v672 = vmax.f32 %v614, 0.0
    %v673 = vmax.f32 %v616, 0.0
    %v674 = vmax.f32 %v619, 0.0
    %v675 = vmax.f32 %v621, 0.0
    %v676 = vmax.f32 %v624, 0.0
    %v677 = vmax.f32 %v626, 0.0
    %v678 = vmax.f32 %v629, 0.0
    %v679 = vmax.f32 %v631, 0.0
    %v680 = vmax.f32 %v634, 0.0
    %v681 = vmax.f32 %v636, 0.0
    %v682 = vmax.f32 %v639, 0.0
    %v683 = vmax.f32 %v641, 0.0
    %v684 = vmax.f32 %v644, 0.0
    %v685 = vmax.f32 %v646, 0.0
    %v686 = vmax.f32 %v649, 0.0
    %v687 = vmax.f32 %v651, 0.0
    %v688 = vmax.f32 %v654, 0.0
    %v689 = vmax.f32 %v656, 0.0
    %v690 = vmin.f32 %v579, 0.0
    %v691 = vmin.f32 %v581, 0.0
    %v692 = vmin.f32 %v584, 0.0
    %v693 = vmin.f32 %v586, 0.0
    %v694 = vmin.f32 %v589, 0.0
    %v695 = vmin.f32 %v591, 0.0
    %v696 = vmin.f32 %v594, 0.0
    %v697 = vmin.f32 %v596, 0.0
    %v698 = vmin.f32 %v599, 0.0
    %v699 = vmin.f32 %v601, 0.0
    %v700 = vmin.f32 %v604, 0.0
    %v701 = vmin.f32 %v606, 0.0
    %v702 = vmin.f32 %v609, 0.0
    %v703 = vmin.f32 %v611, 0.0
    %v704 = vmin.f32 %v614, 0.0
    %v705 = vmin.f32 %v616, 0.0
    %v706 = vmin.f32 %v619, 0.0
    %v707 = vmin.f32 %v621, 0.0
    %v708 = vmin.f32 %v624, 0.0
    %v709 = vmin.f32 %v626, 0.0
    %v710 = vmin.f32 %v629, 0.0
    %v711 = vmin.f32 %v631, 0.0
    %v712 = vmin.f32 %v634, 0.0
    %v713 = vmin.f32 %v636, 0.0
    %v714 = vmin.f32 %v639, 0.0
    %v715 = vmin.f32 %v641, 0.0
    %v716 = vmin.f32 %v644, 0.0
    %v717 = vmin.f32 %v646, 0.0
    %v718 = vmin.f32 %v649, 0.0
    %v719 = vmin.f32 %v651, 0.0
    %v720 = vmin.f32 %v654, 0.0
    %v721 = vmin.f32 %v656, 0.0
    %v722 = vmul.f32 %v690, 1.442695
    %v723 = vpow.pop %v722
    %v724 = vmul.f32 %v691, 1.442695
    %v725 = vpow.pop %v724
    %v726 = vmul.f32 %v692, 1.442695
    %v727 = vpow.pop %v726
    %v728 = vmul.f32 %v693, 1.442695
    %v729 = vpow.pop %v728
    %v730 = vmul.f32 %v694, 1.442695
    %v731 = vpow.pop %v730
    %v732 = vmul.f32 %v695, 1.442695
    %v733 = vpow.pop %v732
    %v734 = vmul.f32 %v696, 1.442695
    %v735 = vpow.pop %v734
    %v736 = vmul.f32 %v697, 1.442695
    %v737 = vpow.pop %v736
    %v738 = vmul.f32 %v698, 1.442695
    %v739 = vpow.pop %v738
    %v740 = vmul.f32 %v699, 1.442695
    %v741 = vpow.pop %v740
    %v742 = vmul.f32 %v700, 1.442695
    %v743 = vpow.pop %v742
    %v744 = vmul.f32 %v701, 1.442695
    %v745 = vpow.pop %v744
    %v746 = vmul.f32 %v702, 1.442695
    %v747 = vpow.pop %v746
    %v748 = vmul.f32 %v703, 1.442695
    %v749 = vpow.pop %v748
    %v750 = vmul.f32 %v704, 1.442695
    %v751 = vpow.pop %v750
    %v752 = vmul.f32 %v705, 1.442695
    %v753 = vpow.pop %v752
    %v754 = vmul.f32 %v706, 1.442695
    %v755 = vpow.pop %v754
    %v756 = vmul.f32 %v707, 1.442695
    %v757 = vpow.pop %v756
    %v758 = vmul.f32 %v708, 1.442695
    %v759 = vpow.pop %v758
    %v760 = vmul.f32 %v709, 1.442695
    %v761 = vpow.pop %v760
    %v762 = vmul.f32 %v710, 1.442695
    %v763 = vpow.pop %v762
    %v764 = vmul.f32 %v711, 1.442695
    %v765 = vpow.pop %v764
    %v766 = vmul.f32 %v712, 1.442695
    %v767 = vpow.pop %v766
    %v768 = vmul.f32 %v713, 1.442695
    %v769 = vpow.pop %v768
    %v770 = vmul.f32 %v714, 1.442695
    %v771 = vpow.pop %v770
    %v772 = vmul.f32 %v715, 1.442695
    %v773 = vpow.pop %v772
    %v774 = vmul.f32 %v716, 1.442695
    %v775 = vpow.pop %v774
    %v776 = vmul.f32 %v717, 1.442695
    %v777 = vpow.pop %v776
    %v778 = vmul.f32 %v718, 1.442695
    %v779 = vpow.pop %v778
    %v780 = vmul.f32 %v719, 1.442695
    %v781 = vpow.pop %v780
    %v782 = vmul.f32 %v720, 1.442695
    %v783 = vpow.pop %v782
    %v784 = vmul.f32 %v721, 1.442695
    %v785 = vpow.pop %v784
    %v786 = vsub.f32 %v723, 1.0
    %v787 = vsub.f32 %v725, 1.0
    %v788 = vsub.f32 %v727, 1.0
    %v789 = vsub.f32 %v729, 1.0
    %v790 = vsub.f32 %v731, 1.0
    %v791 = vsub.f32 %v733, 1.0
    %v792 = vsub.f32 %v735, 1.0
    %v793 = vsub.f32 %v737, 1.0
    %v794 = vsub.f32 %v739, 1.0
    %v795 = vsub.f32 %v741, 1.0
    %v796 = vsub.f32 %v743, 1.0
    %v797 = vsub.f32 %v745, 1.0
    %v798 = vsub.f32 %v747, 1.0
    %v799 = vsub.f32 %v749, 1.0
    %v800 = vsub.f32 %v751, 1.0
    %v801 = vsub.f32 %v753, 1.0
    %v802 = vsub.f32 %v755, 1.0
    %v803 = vsub.f32 %v757, 1.0
    %v804 = vsub.f32 %v759, 1.0
    %v805 = vsub.f32 %v761, 1.0
    %v806 = vsub.f32 %v763, 1.0
    %v807 = vsub.f32 %v765, 1.0
    %v808 = vsub.f32 %v767, 1.0
    %v809 = vsub.f32 %v769, 1.0
    %v810 = vsub.f32 %v771, 1.0
    %v811 = vsub.f32 %v773, 1.0
    %v812 = vsub.f32 %v775, 1.0
    %v813 = vsub.f32 %v777, 1.0
    %v814 = vsub.f32 %v779, 1.0
    %v815 = vsub.f32 %v781, 1.0
    %v816 = vsub.f32 %v783, 1.0
    %v817 = vsub.f32 %v785, 1.0
    %v818 = vmul.f32 %v786, 1.6732632
    %v819 = vmul.f32 %v787, 1.6732632
    %v820 = vmul.f32 %v788, 1.6732632
    %v821 = vmul.f32 %v789, 1.6732632
    %v822 = vmul.f32 %v790, 1.6732632
    %v823 = vmul.f32 %v791, 1.6732632
    %v824 = vmul.f32 %v792, 1.6732632
    %v825 = vmul.f32 %v793, 1.6732632
    %v826 = vmul.f32 %v794, 1.6732632
    %v827 = vmul.f32 %v795, 1.6732632
    %v828 = vmul.f32 %v796, 1.6732632
    %v829 = vmul.f32 %v797, 1.6732632
    %v830 = vmul.f32 %v798, 1.6732632
    %v831 = vmul.f32 %v799, 1.6732632
    %v832 = vmul.f32 %v800, 1.6732632
    %v833 = vmul.f32 %v801, 1.6732632
    %v834 = vmul.f32 %v802, 1.6732632
    %v835 = vmul.f32 %v803, 1.6732632
    %v836 = vmul.f32 %v804, 1.6732632
    %v837 = vmul.f32 %v805, 1.6732632
    %v838 = vmul.f32 %v806, 1.6732632
    %v839 = vmul.f32 %v807, 1.6732632
    %v840 = vmul.f32 %v808, 1.6732632
    %v841 = vmul.f32 %v809, 1.6732632
    %v842 = vmul.f32 %v810, 1.6732632
    %v843 = vmul.f32 %v811, 1.6732632
    %v844 = vmul.f32 %v812, 1.6732632
    %v845 = vmul.f32 %v813, 1.6732632
    %v846 = vmul.f32 %v814, 1.6732632
    %v847 = vmul.f32 %v815, 1.6732632
    %v848 = vmul.f32 %v816, 1.6732632
    %v849 = vmul.f32 %v817, 1.6732632
    %v850 = vadd.f32 %v658, %v818
    %v851 = vadd.f32 %v659, %v819
    %v852 = vadd.f32 %v660, %v820
    %v853 = vadd.f32 %v661, %v821
    %v854 = vadd.f32 %v662, %v822
    %v855 = vadd.f32 %v663, %v823
    %v856 = vadd.f32 %v664, %v824
    %v857 = vadd.f32 %v665, %v825
    %v858 = vadd.f32 %v666, %v826
    %v859 = vadd.f32 %v667, %v827
    %v860 = vadd.f32 %v668, %v828
    %v861 = vadd.f32 %v669, %v829
    %v862 = vadd.f32 %v670, %v830
    %v863 = vadd.f32 %v671, %v831
    %v864 = vadd.f32 %v672, %v832
    %v865 = vadd.f32 %v673, %v833
    %v866 = vadd.f32 %v674, %v834
    %v867 = vadd.f32 %v675, %v835
    %v868 = vadd.f32 %v676, %v836
    %v869 = vadd.f32 %v677, %v837
    %v870 = vadd.f32 %v678, %v838
    %v871 = vadd.f32 %v679, %v839
    %v872 = vadd.f32 %v680, %v840
    %v873 = vadd.f32 %v681, %v841
    %v874 = vadd.f32 %v682, %v842
    %v875 = vadd.f32 %v683, %v843
    %v876 = vadd.f32 %v684, %v844
    %v877 = vadd.f32 %v685, %v845
    %v878 = vadd.f32 %v686, %v846
    %v879 = vadd.f32 %v687, %v847
    %v880 = vadd.f32 %v688, %v848
    %v881 = vadd.f32 %v689, %v849
    %v882 = vmul.f32 %v850, 1.050701
    %v883 = vmul.f32 %v851, 1.050701
    %v884 = vmul.f32 %v852, 1.050701
    %v885 = vmul.f32 %v853, 1.050701
    %v886 = vmul.f32 %v854, 1.050701
    %v887 = vmul.f32 %v855, 1.050701
    %v888 = vmul.f32 %v856, 1.050701
    %v889 = vmul.f32 %v857, 1.050701
    %v890 = vmul.f32 %v858, 1.050701
    %v891 = vmul.f32 %v859, 1.050701
    %v892 = vmul.f32 %v860, 1.050701
    %v893 = vmul.f32 %v861, 1.050701
    %v894 = vmul.f32 %v862, 1.050701
    %v895 = vmul.f32 %v863, 1.050701
    %v896 = vmul.f32 %v864, 1.050701
    %v897 = vmul.f32 %v865, 1.050701
    %v898 = vmul.f32 %v866, 1.050701
    %v899 = vmul.f32 %v867, 1.050701
    %v900 = vmul.f32 %v868, 1.050701
    %v901 = vmul.f32 %v869, 1.050701
    %v902 = vmul.f32 %v870, 1.050701
    %v903 = vmul.f32 %v871, 1.050701
    %v904 = vmul.f32 %v872, 1.050701
    %v905 = vmul.f32 %v873, 1.050701
    %v906 = vmul.f32 %v874, 1.050701
    %v907 = vmul.f32 %v875, 1.050701
    %v908 = vmul.f32 %v876, 1.050701
    %v909 = vmul.f32 %v877, 1.050701
    %v910 = vmul.f32 %v878, 1.050701
    %v911 = vmul.f32 %v879, 1.050701
    %v912 = vmul.f32 %v880, 1.050701
    %v913 = vmul.f32 %v881, 1.050701
    %v914 = vpack.c.bf16 %v883, %v882
    %v915 = vpack.c.bf16 %v885, %v884
    %v916 = vpack.c.bf16 %v887, %v886
    %v917 = vpack.c.bf16 %v889, %v888
    %v918 = vpack.c.bf16 %v891, %v890
    %v919 = vpack.c.bf16 %v893, %v892
    %v920 = vpack.c.bf16 %v895, %v894
    %v921 = vpack.c.bf16 %v897, %v896
    %v922 = vpack.c.bf16 %v899, %v898
    %v923 = vpack.c.bf16 %v901, %v900
    %v924 = vpack.c.bf16 %v903, %v902
    %v925 = vpack.c.bf16 %v905, %v904
    %v926 = vpack.c.bf16 %v907, %v906
    %v927 = vpack.c.bf16 %v909, %v908
    %v928 = vpack.c.bf16 %v911, %v910
    %v929 = vpack.c.bf16 %v913, %v912
    %v930 = vld [vmem:[%s5] sm:$0xf]
    %v931 = vld [vmem:[%s5 + $0x4] sm:$0xf]
    %v932 = vld [vmem:[%s5 + $0x8] sm:$0xf]
    %v933 = vld [vmem:[%s5 + $0xc] sm:$0xf]
    %v934 = vld [vmem:[%s5 + $0x10] sm:$0xf]
    %v935 = vld [vmem:[%s5 + $0x14] sm:$0xf]
    %v936 = vld [vmem:[%s5 + $0x18] sm:$0xf]
    %v937 = vld [vmem:[%s5 + $0x1c] sm:$0xf]
    %v938 = vld [vmem:[%s5 + $0x20] sm:$0xf]
    %v939 = vld [vmem:[%s5 + $0x24] sm:$0xf]
    %v940 = vld [vmem:[%s5 + $0x28] sm:$0xf]
    %v941 = vld [vmem:[%s5 + $0x2c] sm:$0xf]
    %v942 = vld [vmem:[%s5 + $0x30] sm:$0xf]
    %v943 = vld [vmem:[%s5 + $0x34] sm:$0xf]
    %v944 = vld [vmem:[%s5 + $0x38] sm:$0xf]
    %v945 = vld [vmem:[%s5 + $0x3c] sm:$0xf]
    %v946 = vld [vmem:[%s6] sm:$0x1]
    %v948 = vperm.slane %v946, 0
    %v966 = vunpack.c.l.b16 %v930
    %v967 = vunpack.c.l.b16 %v931
    %v968 = vunpack.c.l.b16 %v932
    %v969 = vunpack.c.l.b16 %v933
    %v970 = vunpack.c.l.b16 %v934
    %v971 = vunpack.c.l.b16 %v935
    %v972 = vunpack.c.l.b16 %v936
    %v973 = vunpack.c.l.b16 %v937
    %v974 = vunpack.c.l.b16 %v938
    %v975 = vunpack.c.l.b16 %v939
    %v976 = vunpack.c.l.b16 %v940
    %v977 = vunpack.c.l.b16 %v941
    %v978 = vunpack.c.l.b16 %v942
    %v979 = vunpack.c.l.b16 %v943
    %v980 = vunpack.c.l.b16 %v944
    %v981 = vunpack.c.l.b16 %v945
    %v982 = vpack.c.b16 %v967, %v966
    %v983 = vpack.c.b16 %v969, %v968
    %v984 = vpack.c.b16 %v971, %v970
    %v985 = vpack.c.b16 %v973, %v972
    %v986 = vpack.c.b16 %v975, %v974
    %v987 = vpack.c.b16 %v977, %v976
    %v988 = vpack.c.b16 %v979, %v978
    %v989 = vpack.c.b16 %v981, %v980
    %998 = vmatpush.bf16.msra.mxu0 %v989
    %999 = vmatpush.bf16.msra.mxu0 %v988
    %1000 = vmatpush.bf16.msra.mxu0 %v987
    %1001 = vmatpush.bf16.msra.mxu0 %v986
    %1002 = vmatpush.bf16.msra.mxu0 %v985
    %1003 = vmatpush.bf16.msra.mxu0 %v984
    %1004 = vmatpush.bf16.msra.mxu0 %v983
    %1005 = vmatpush.bf16.msra.mxu0 %v982
    %1006 = vmatmul.bf16.gmra.mxu0 %v914
    %v1007 = vpop.f32.mrf.mxu0
    %v1008 = vadd.f32 %v948, %v1007
    %v1009 = vpop.f32.mrf.mxu0
    %v1010 = vadd.f32 %v948, %v1009
    %1011 = vmatmul.bf16.gmra.mxu0 %v915
    %v1012 = vpop.f32.mrf.mxu0
    %v1013 = vadd.f32 %v948, %v1012
    %v1014 = vpop.f32.mrf.mxu0
    %v1015 = vadd.f32 %v948, %v1014
    %1016 = vmatmul.bf16.gmra.mxu0 %v916
    %v1017 = vpop.f32.mrf.mxu0
    %v1018 = vadd.f32 %v948, %v1017
    %v1019 = vpop.f32.mrf.mxu0
    %v1020 = vadd.f32 %v948, %v1019
    %1021 = vmatmul.bf16.gmra.mxu0 %v917
    %v1022 = vpop.f32.mrf.mxu0
    %v1023 = vadd.f32 %v948, %v1022
    %v1024 = vpop.f32.mrf.mxu0
    %v1025 = vadd.f32 %v948, %v1024
    %1026 = vmatmul.bf16.gmra.mxu0 %v918
    %v1027 = vpop.f32.mrf.mxu0
    %v1028 = vadd.f32 %v948, %v1027
    %v1029 = vpop.f32.mrf.mxu0
    %v1030 = vadd.f32 %v948, %v1029
    %1031 = vmatmul.bf16.gmra.mxu0 %v919
    %v1032 = vpop.f32.mrf.mxu0
    %v1033 = vadd.f32 %v948, %v1032
    %v1034 = vpop.f32.mrf.mxu0
    %v1035 = vadd.f32 %v948, %v1034
    %1036 = vmatmul.bf16.gmra.mxu0 %v920
    %v1037 = vpop.f32.mrf.mxu0
    %v1038 = vadd.f32 %v948, %v1037
    %v1039 = vpop.f32.mrf.mxu0
    %v1040 = vadd.f32 %v948, %v1039
    %1041 = vmatmul.bf16.gmra.mxu0 %v921
    %v1042 = vpop.f32.mrf.mxu0
    %v1043 = vadd.f32 %v948, %v1042
    %v1044 = vpop.f32.mrf.mxu0
    %v1045 = vadd.f32 %v948, %v1044
    %1046 = vmatmul.bf16.gmra.mxu0 %v922
    %v1047 = vpop.f32.mrf.mxu0
    %v1048 = vadd.f32 %v948, %v1047
    %v1049 = vpop.f32.mrf.mxu0
    %v1050 = vadd.f32 %v948, %v1049
    %1051 = vmatmul.bf16.gmra.mxu0 %v923
    %v1052 = vpop.f32.mrf.mxu0
    %v1053 = vadd.f32 %v948, %v1052
    %v1054 = vpop.f32.mrf.mxu0
    %v1055 = vadd.f32 %v948, %v1054
    %1056 = vmatmul.bf16.gmra.mxu0 %v924
    %v1057 = vpop.f32.mrf.mxu0
    %v1058 = vadd.f32 %v948, %v1057
    %v1059 = vpop.f32.mrf.mxu0
    %v1060 = vadd.f32 %v948, %v1059
    %1061 = vmatmul.bf16.gmra.mxu0 %v925
    %v1062 = vpop.f32.mrf.mxu0
    %v1063 = vadd.f32 %v948, %v1062
    %v1064 = vpop.f32.mrf.mxu0
    %v1065 = vadd.f32 %v948, %v1064
    %1066 = vmatmul.bf16.gmra.mxu0 %v926
    %v1067 = vpop.f32.mrf.mxu0
    %v1068 = vadd.f32 %v948, %v1067
    %v1069 = vpop.f32.mrf.mxu0
    %v1070 = vadd.f32 %v948, %v1069
    %1071 = vmatmul.bf16.gmra.mxu0 %v927
    %v1072 = vpop.f32.mrf.mxu0
    %v1073 = vadd.f32 %v948, %v1072
    %v1074 = vpop.f32.mrf.mxu0
    %v1075 = vadd.f32 %v948, %v1074
    %1076 = vmatmul.bf16.gmra.mxu0 %v928
    %v1077 = vpop.f32.mrf.mxu0
    %v1078 = vadd.f32 %v948, %v1077
    %v1079 = vpop.f32.mrf.mxu0
    %v1080 = vadd.f32 %v948, %v1079
    %1081 = vmatmul.bf16.gmra.mxu0 %v929
    %v1082 = vpop.f32.mrf.mxu0
    %v1083 = vadd.f32 %v948, %v1082
    %v1084 = vpop.f32.mrf.mxu0
    %v1085 = vadd.f32 %v948, %v1084
    %1086 = vdwg.mxu0
    %v1087 = vxor.u32 %v1008, 2147483648
    %v1088 = vxor.u32 %v1010, 2147483648
    %v1089 = vxor.u32 %v1013, 2147483648
    %v1090 = vxor.u32 %v1015, 2147483648
    %v1091 = vxor.u32 %v1018, 2147483648
    %v1092 = vxor.u32 %v1020, 2147483648
    %v1093 = vxor.u32 %v1023, 2147483648
    %v1094 = vxor.u32 %v1025, 2147483648
    %v1095 = vxor.u32 %v1028, 2147483648
    %v1096 = vxor.u32 %v1030, 2147483648
    %v1097 = vxor.u32 %v1033, 2147483648
    %v1098 = vxor.u32 %v1035, 2147483648
    %v1099 = vxor.u32 %v1038, 2147483648
    %v1100 = vxor.u32 %v1040, 2147483648
    %v1101 = vxor.u32 %v1043, 2147483648
    %v1102 = vxor.u32 %v1045, 2147483648
    %v1103 = vxor.u32 %v1048, 2147483648
    %v1104 = vxor.u32 %v1050, 2147483648
    %v1105 = vxor.u32 %v1053, 2147483648
    %v1106 = vxor.u32 %v1055, 2147483648
    %v1107 = vxor.u32 %v1058, 2147483648
    %v1108 = vxor.u32 %v1060, 2147483648
    %v1109 = vxor.u32 %v1063, 2147483648
    %v1110 = vxor.u32 %v1065, 2147483648
    %v1111 = vxor.u32 %v1068, 2147483648
    %v1112 = vxor.u32 %v1070, 2147483648
    %v1113 = vxor.u32 %v1073, 2147483648
    %v1114 = vxor.u32 %v1075, 2147483648
    %v1115 = vxor.u32 %v1078, 2147483648
    %v1116 = vxor.u32 %v1080, 2147483648
    %v1117 = vxor.u32 %v1083, 2147483648
    %v1118 = vxor.u32 %v1085, 2147483648
    %v1119 = vmul.f32 %v1087, 1.442695
    %v1120 = vpow.pop %v1119
    %v1121 = vmul.f32 %v1088, 1.442695
    %v1122 = vpow.pop %v1121
    %v1123 = vmul.f32 %v1089, 1.442695
    %v1124 = vpow.pop %v1123
    %v1125 = vmul.f32 %v1090, 1.442695
    %v1126 = vpow.pop %v1125
    %v1127 = vmul.f32 %v1091, 1.442695
    %v1128 = vpow.pop %v1127
    %v1129 = vmul.f32 %v1092, 1.442695
    %v1130 = vpow.pop %v1129
    %v1131 = vmul.f32 %v1093, 1.442695
    %v1132 = vpow.pop %v1131
    %v1133 = vmul.f32 %v1094, 1.442695
    %v1134 = vpow.pop %v1133
    %v1135 = vmul.f32 %v1095, 1.442695
    %v1136 = vpow.pop %v1135
    %v1137 = vmul.f32 %v1096, 1.442695
    %v1138 = vpow.pop %v1137
    %v1139 = vmul.f32 %v1097, 1.442695
    %v1140 = vpow.pop %v1139
    %v1141 = vmul.f32 %v1098, 1.442695
    %v1142 = vpow.pop %v1141
    %v1143 = vmul.f32 %v1099, 1.442695
    %v1144 = vpow.pop %v1143
    %v1145 = vmul.f32 %v1100, 1.442695
    %v1146 = vpow.pop %v1145
    %v1147 = vmul.f32 %v1101, 1.442695
    %v1148 = vpow.pop %v1147
    %v1149 = vmul.f32 %v1102, 1.442695
    %v1150 = vpow.pop %v1149
    %v1151 = vmul.f32 %v1103, 1.442695
    %v1152 = vpow.pop %v1151
    %v1153 = vmul.f32 %v1104, 1.442695
    %v1154 = vpow.pop %v1153
    %v1155 = vmul.f32 %v1105, 1.442695
    %v1156 = vpow.pop %v1155
    %v1157 = vmul.f32 %v1106, 1.442695
    %v1158 = vpow.pop %v1157
    %v1159 = vmul.f32 %v1107, 1.442695
    %v1160 = vpow.pop %v1159
    %v1161 = vmul.f32 %v1108, 1.442695
    %v1162 = vpow.pop %v1161
    %v1163 = vmul.f32 %v1109, 1.442695
    %v1164 = vpow.pop %v1163
    %v1165 = vmul.f32 %v1110, 1.442695
    %v1166 = vpow.pop %v1165
    %v1167 = vmul.f32 %v1111, 1.442695
    %v1168 = vpow.pop %v1167
    %v1169 = vmul.f32 %v1112, 1.442695
    %v1170 = vpow.pop %v1169
    %v1171 = vmul.f32 %v1113, 1.442695
    %v1172 = vpow.pop %v1171
    %v1173 = vmul.f32 %v1114, 1.442695
    %v1174 = vpow.pop %v1173
    %v1175 = vmul.f32 %v1115, 1.442695
    %v1176 = vpow.pop %v1175
    %v1177 = vmul.f32 %v1116, 1.442695
    %v1178 = vpow.pop %v1177
    %v1179 = vmul.f32 %v1117, 1.442695
    %v1180 = vpow.pop %v1179
    %v1181 = vmul.f32 %v1118, 1.442695
    %v1182 = vpow.pop %v1181
    %v1183 = vadd.f32 %v1120, 1.0
    %v1184 = vadd.f32 %v1122, 1.0
    %v1185 = vadd.f32 %v1124, 1.0
    %v1186 = vadd.f32 %v1126, 1.0
    %v1187 = vadd.f32 %v1128, 1.0
    %v1188 = vadd.f32 %v1130, 1.0
    %v1189 = vadd.f32 %v1132, 1.0
    %v1190 = vadd.f32 %v1134, 1.0
    %v1191 = vadd.f32 %v1136, 1.0
    %v1192 = vadd.f32 %v1138, 1.0
    %v1193 = vadd.f32 %v1140, 1.0
    %v1194 = vadd.f32 %v1142, 1.0
    %v1195 = vadd.f32 %v1144, 1.0
    %v1196 = vadd.f32 %v1146, 1.0
    %v1197 = vadd.f32 %v1148, 1.0
    %v1198 = vadd.f32 %v1150, 1.0
    %v1199 = vadd.f32 %v1152, 1.0
    %v1200 = vadd.f32 %v1154, 1.0
    %v1201 = vadd.f32 %v1156, 1.0
    %v1202 = vadd.f32 %v1158, 1.0
    %v1203 = vadd.f32 %v1160, 1.0
    %v1204 = vadd.f32 %v1162, 1.0
    %v1205 = vadd.f32 %v1164, 1.0
    %v1206 = vadd.f32 %v1166, 1.0
    %v1207 = vadd.f32 %v1168, 1.0
    %v1208 = vadd.f32 %v1170, 1.0
    %v1209 = vadd.f32 %v1172, 1.0
    %v1210 = vadd.f32 %v1174, 1.0
    %v1211 = vadd.f32 %v1176, 1.0
    %v1212 = vadd.f32 %v1178, 1.0
    %v1213 = vadd.f32 %v1180, 1.0
    %v1214 = vadd.f32 %v1182, 1.0
    %v1215 = vrcp.pop %v1183
    %v1216 = vmul.f32 %v1183, %v1215
    %v1217 = vsub.f32 1.0, %v1216
    %v1218 = vmul.f32 %v1215, %v1217
    %v1219 = vadd.f32 %v1215, %v1218
    %vm1220 = vweird.f32 %v1183
    %vm1221 = vweird.f32 %v1215
    %vm1222 = vmor %vm1220, %vm1221
    %v1223 = vsel %vm1222, %v1215, %v1219
    %v1224 = vand.u32 2147483647, %v1183
    %vm1225 = vcmp.eq.f32.partialorder %v1224, 8.507059e+37
    %v1226 = vand.u32 %v1183, 2147483648
    %v1227 = vor.u32 1.1754944e-38, %v1226
    %v1228 = vsel %vm1225, %v1227, %v1223
    %v1229 = vmul.f32 1.0, %v1228
    %v1230 = vrcp.pop %v1184
    %v1231 = vmul.f32 %v1184, %v1230
    %v1232 = vsub.f32 1.0, %v1231
    %v1233 = vmul.f32 %v1230, %v1232
    %v1234 = vadd.f32 %v1230, %v1233
    %vm1235 = vweird.f32 %v1184
    %vm1236 = vweird.f32 %v1230
    %vm1237 = vmor %vm1235, %vm1236
    %v1238 = vsel %vm1237, %v1230, %v1234
    %v1239 = vand.u32 2147483647, %v1184
    %vm1240 = vcmp.eq.f32.partialorder %v1239, 8.507059e+37
    %v1241 = vand.u32 %v1184, 2147483648
    %v1242 = vor.u32 1.1754944e-38, %v1241
    %v1243 = vsel %vm1240, %v1242, %v1238
    %v1244 = vmul.f32 1.0, %v1243
    %v1245 = vrcp.pop %v1185
    %v1246 = vmul.f32 %v1185, %v1245
    %v1247 = vsub.f32 1.0, %v1246
    %v1248 = vmul.f32 %v1245, %v1247
    %v1249 = vadd.f32 %v1245, %v1248
    %vm1250 = vweird.f32 %v1185
    %vm1251 = vweird.f32 %v1245
    %vm1252 = vmor %vm1250, %vm1251
    %v1253 = vsel %vm1252, %v1245, %v1249
    %v1254 = vand.u32 2147483647, %v1185
    %vm1255 = vcmp.eq.f32.partialorder %v1254, 8.507059e+37
    %v1256 = vand.u32 %v1185, 2147483648
    %v1257 = vor.u32 1.1754944e-38, %v1256
    %v1258 = vsel %vm1255, %v1257, %v1253
    %v1259 = vmul.f32 1.0, %v1258
    %v1260 = vrcp.pop %v1186
    %v1261 = vmul.f32 %v1186, %v1260
    %v1262 = vsub.f32 1.0, %v1261
    %v1263 = vmul.f32 %v1260, %v1262
    %v1264 = vadd.f32 %v1260, %v1263
    %vm1265 = vweird.f32 %v1186
    %vm1266 = vweird.f32 %v1260
    %vm1267 = vmor %vm1265, %vm1266
    %v1268 = vsel %vm1267, %v1260, %v1264
    %v1269 = vand.u32 2147483647, %v1186
    %vm1270 = vcmp.eq.f32.partialorder %v1269, 8.507059e+37
    %v1271 = vand.u32 %v1186, 2147483648
    %v1272 = vor.u32 1.1754944e-38, %v1271
    %v1273 = vsel %vm1270, %v1272, %v1268
    %v1274 = vmul.f32 1.0, %v1273
    %v1275 = vrcp.pop %v1187
    %v1276 = vmul.f32 %v1187, %v1275
    %v1277 = vsub.f32 1.0, %v1276
    %v1278 = vmul.f32 %v1275, %v1277
    %v1279 = vadd.f32 %v1275, %v1278
    %vm1280 = vweird.f32 %v1187
    %vm1281 = vweird.f32 %v1275
    %vm1282 = vmor %vm1280, %vm1281
    %v1283 = vsel %vm1282, %v1275, %v1279
    %v1284 = vand.u32 2147483647, %v1187
    %vm1285 = vcmp.eq.f32.partialorder %v1284, 8.507059e+37
    %v1286 = vand.u32 %v1187, 2147483648
    %v1287 = vor.u32 1.1754944e-38, %v1286
    %v1288 = vsel %vm1285, %v1287, %v1283
    %v1289 = vmul.f32 1.0, %v1288
    %v1290 = vrcp.pop %v1188
    %v1291 = vmul.f32 %v1188, %v1290
    %v1292 = vsub.f32 1.0, %v1291
    %v1293 = vmul.f32 %v1290, %v1292
    %v1294 = vadd.f32 %v1290, %v1293
    %vm1295 = vweird.f32 %v1188
    %vm1296 = vweird.f32 %v1290
    %vm1297 = vmor %vm1295, %vm1296
    %v1298 = vsel %vm1297, %v1290, %v1294
    %v1299 = vand.u32 2147483647, %v1188
    %vm1300 = vcmp.eq.f32.partialorder %v1299, 8.507059e+37
    %v1301 = vand.u32 %v1188, 2147483648
    %v1302 = vor.u32 1.1754944e-38, %v1301
    %v1303 = vsel %vm1300, %v1302, %v1298
    %v1304 = vmul.f32 1.0, %v1303
    %v1305 = vrcp.pop %v1189
    %v1306 = vmul.f32 %v1189, %v1305
    %v1307 = vsub.f32 1.0, %v1306
    %v1308 = vmul.f32 %v1305, %v1307
    %v1309 = vadd.f32 %v1305, %v1308
    %vm1310 = vweird.f32 %v1189
    %vm1311 = vweird.f32 %v1305
    %vm1312 = vmor %vm1310, %vm1311
    %v1313 = vsel %vm1312, %v1305, %v1309
    %v1314 = vand.u32 2147483647, %v1189
    %vm1315 = vcmp.eq.f32.partialorder %v1314, 8.507059e+37
    %v1316 = vand.u32 %v1189, 2147483648
    %v1317 = vor.u32 1.1754944e-38, %v1316
    %v1318 = vsel %vm1315, %v1317, %v1313
    %v1319 = vmul.f32 1.0, %v1318
    %v1320 = vrcp.pop %v1190
    %v1321 = vmul.f32 %v1190, %v1320
    %v1322 = vsub.f32 1.0, %v1321
    %v1323 = vmul.f32 %v1320, %v1322
    %v1324 = vadd.f32 %v1320, %v1323
    %vm1325 = vweird.f32 %v1190
    %vm1326 = vweird.f32 %v1320
    %vm1327 = vmor %vm1325, %vm1326
    %v1328 = vsel %vm1327, %v1320, %v1324
    %v1329 = vand.u32 2147483647, %v1190
    %vm1330 = vcmp.eq.f32.partialorder %v1329, 8.507059e+37
    %v1331 = vand.u32 %v1190, 2147483648
    %v1332 = vor.u32 1.1754944e-38, %v1331
    %v1333 = vsel %vm1330, %v1332, %v1328
    %v1334 = vmul.f32 1.0, %v1333
    %v1335 = vrcp.pop %v1191
    %v1336 = vmul.f32 %v1191, %v1335
    %v1337 = vsub.f32 1.0, %v1336
    %v1338 = vmul.f32 %v1335, %v1337
    %v1339 = vadd.f32 %v1335, %v1338
    %vm1340 = vweird.f32 %v1191
    %vm1341 = vweird.f32 %v1335
    %vm1342 = vmor %vm1340, %vm1341
    %v1343 = vsel %vm1342, %v1335, %v1339
    %v1344 = vand.u32 2147483647, %v1191
    %vm1345 = vcmp.eq.f32.partialorder %v1344, 8.507059e+37
    %v1346 = vand.u32 %v1191, 2147483648
    %v1347 = vor.u32 1.1754944e-38, %v1346
    %v1348 = vsel %vm1345, %v1347, %v1343
    %v1349 = vmul.f32 1.0, %v1348
    %v1350 = vrcp.pop %v1192
    %v1351 = vmul.f32 %v1192, %v1350
    %v1352 = vsub.f32 1.0, %v1351
    %v1353 = vmul.f32 %v1350, %v1352
    %v1354 = vadd.f32 %v1350, %v1353
    %vm1355 = vweird.f32 %v1192
    %vm1356 = vweird.f32 %v1350
    %vm1357 = vmor %vm1355, %vm1356
    %v1358 = vsel %vm1357, %v1350, %v1354
    %v1359 = vand.u32 2147483647, %v1192
    %vm1360 = vcmp.eq.f32.partialorder %v1359, 8.507059e+37
    %v1361 = vand.u32 %v1192, 2147483648
    %v1362 = vor.u32 1.1754944e-38, %v1361
    %v1363 = vsel %vm1360, %v1362, %v1358
    %v1364 = vmul.f32 1.0, %v1363
    %v1365 = vrcp.pop %v1193
    %v1366 = vmul.f32 %v1193, %v1365
    %v1367 = vsub.f32 1.0, %v1366
    %v1368 = vmul.f32 %v1365, %v1367
    %v1369 = vadd.f32 %v1365, %v1368
    %vm1370 = vweird.f32 %v1193
    %vm1371 = vweird.f32 %v1365
    %vm1372 = vmor %vm1370, %vm1371
    %v1373 = vsel %vm1372, %v1365, %v1369
    %v1374 = vand.u32 2147483647, %v1193
    %vm1375 = vcmp.eq.f32.partialorder %v1374, 8.507059e+37
    %v1376 = vand.u32 %v1193, 2147483648
    %v1377 = vor.u32 1.1754944e-38, %v1376
    %v1378 = vsel %vm1375, %v1377, %v1373
    %v1379 = vmul.f32 1.0, %v1378
    %v1380 = vrcp.pop %v1194
    %v1381 = vmul.f32 %v1194, %v1380
    %v1382 = vsub.f32 1.0, %v1381
    %v1383 = vmul.f32 %v1380, %v1382
    %v1384 = vadd.f32 %v1380, %v1383
    %vm1385 = vweird.f32 %v1194
    %vm1386 = vweird.f32 %v1380
    %vm1387 = vmor %vm1385, %vm1386
    %v1388 = vsel %vm1387, %v1380, %v1384
    %v1389 = vand.u32 2147483647, %v1194
    %vm1390 = vcmp.eq.f32.partialorder %v1389, 8.507059e+37
    %v1391 = vand.u32 %v1194, 2147483648
    %v1392 = vor.u32 1.1754944e-38, %v1391
    %v1393 = vsel %vm1390, %v1392, %v1388
    %v1394 = vmul.f32 1.0, %v1393
    %v1395 = vrcp.pop %v1195
    %v1396 = vmul.f32 %v1195, %v1395
    %v1397 = vsub.f32 1.0, %v1396
    %v1398 = vmul.f32 %v1395, %v1397
    %v1399 = vadd.f32 %v1395, %v1398
    %vm1400 = vweird.f32 %v1195
    %vm1401 = vweird.f32 %v1395
    %vm1402 = vmor %vm1400, %vm1401
    %v1403 = vsel %vm1402, %v1395, %v1399
    %v1404 = vand.u32 2147483647, %v1195
    %vm1405 = vcmp.eq.f32.partialorder %v1404, 8.507059e+37
    %v1406 = vand.u32 %v1195, 2147483648
    %v1407 = vor.u32 1.1754944e-38, %v1406
    %v1408 = vsel %vm1405, %v1407, %v1403
    %v1409 = vmul.f32 1.0, %v1408
    %v1410 = vrcp.pop %v1196
    %v1411 = vmul.f32 %v1196, %v1410
    %v1412 = vsub.f32 1.0, %v1411
    %v1413 = vmul.f32 %v1410, %v1412
    %v1414 = vadd.f32 %v1410, %v1413
    %vm1415 = vweird.f32 %v1196
    %vm1416 = vweird.f32 %v1410
    %vm1417 = vmor %vm1415, %vm1416
    %v1418 = vsel %vm1417, %v1410, %v1414
    %v1419 = vand.u32 2147483647, %v1196
    %vm1420 = vcmp.eq.f32.partialorder %v1419, 8.507059e+37
    %v1421 = vand.u32 %v1196, 2147483648
    %v1422 = vor.u32 1.1754944e-38, %v1421
    %v1423 = vsel %vm1420, %v1422, %v1418
    %v1424 = vmul.f32 1.0, %v1423
    %v1425 = vrcp.pop %v1197
    %v1426 = vmul.f32 %v1197, %v1425
    %v1427 = vsub.f32 1.0, %v1426
    %v1428 = vmul.f32 %v1425, %v1427
    %v1429 = vadd.f32 %v1425, %v1428
    %vm1430 = vweird.f32 %v1197
    %vm1431 = vweird.f32 %v1425
    %vm1432 = vmor %vm1430, %vm1431
    %v1433 = vsel %vm1432, %v1425, %v1429
    %v1434 = vand.u32 2147483647, %v1197
    %vm1435 = vcmp.eq.f32.partialorder %v1434, 8.507059e+37
    %v1436 = vand.u32 %v1197, 2147483648
    %v1437 = vor.u32 1.1754944e-38, %v1436
    %v1438 = vsel %vm1435, %v1437, %v1433
    %v1439 = vmul.f32 1.0, %v1438
    %v1440 = vrcp.pop %v1198
    %v1441 = vmul.f32 %v1198, %v1440
    %v1442 = vsub.f32 1.0, %v1441
    %v1443 = vmul.f32 %v1440, %v1442
    %v1444 = vadd.f32 %v1440, %v1443
    %vm1445 = vweird.f32 %v1198
    %vm1446 = vweird.f32 %v1440
    %vm1447 = vmor %vm1445, %vm1446
    %v1448 = vsel %vm1447, %v1440, %v1444
    %v1449 = vand.u32 2147483647, %v1198
    %vm1450 = vcmp.eq.f32.partialorder %v1449, 8.507059e+37
    %v1451 = vand.u32 %v1198, 2147483648
    %v1452 = vor.u32 1.1754944e-38, %v1451
    %v1453 = vsel %vm1450, %v1452, %v1448
    %v1454 = vmul.f32 1.0, %v1453
    %v1455 = vrcp.pop %v1199
    %v1456 = vmul.f32 %v1199, %v1455
    %v1457 = vsub.f32 1.0, %v1456
    %v1458 = vmul.f32 %v1455, %v1457
    %v1459 = vadd.f32 %v1455, %v1458
    %vm1460 = vweird.f32 %v1199
    %vm1461 = vweird.f32 %v1455
    %vm1462 = vmor %vm1460, %vm1461
    %v1463 = vsel %vm1462, %v1455, %v1459
    %v1464 = vand.u32 2147483647, %v1199
    %vm1465 = vcmp.eq.f32.partialorder %v1464, 8.507059e+37
    %v1466 = vand.u32 %v1199, 2147483648
    %v1467 = vor.u32 1.1754944e-38, %v1466
    %v1468 = vsel %vm1465, %v1467, %v1463
    %v1469 = vmul.f32 1.0, %v1468
    %v1470 = vrcp.pop %v1200
    %v1471 = vmul.f32 %v1200, %v1470
    %v1472 = vsub.f32 1.0, %v1471
    %v1473 = vmul.f32 %v1470, %v1472
    %v1474 = vadd.f32 %v1470, %v1473
    %vm1475 = vweird.f32 %v1200
    %vm1476 = vweird.f32 %v1470
    %vm1477 = vmor %vm1475, %vm1476
    %v1478 = vsel %vm1477, %v1470, %v1474
    %v1479 = vand.u32 2147483647, %v1200
    %vm1480 = vcmp.eq.f32.partialorder %v1479, 8.507059e+37
    %v1481 = vand.u32 %v1200, 2147483648
    %v1482 = vor.u32 1.1754944e-38, %v1481
    %v1483 = vsel %vm1480, %v1482, %v1478
    %v1484 = vmul.f32 1.0, %v1483
    %v1485 = vrcp.pop %v1201
    %v1486 = vmul.f32 %v1201, %v1485
    %v1487 = vsub.f32 1.0, %v1486
    %v1488 = vmul.f32 %v1485, %v1487
    %v1489 = vadd.f32 %v1485, %v1488
    %vm1490 = vweird.f32 %v1201
    %vm1491 = vweird.f32 %v1485
    %vm1492 = vmor %vm1490, %vm1491
    %v1493 = vsel %vm1492, %v1485, %v1489
    %v1494 = vand.u32 2147483647, %v1201
    %vm1495 = vcmp.eq.f32.partialorder %v1494, 8.507059e+37
    %v1496 = vand.u32 %v1201, 2147483648
    %v1497 = vor.u32 1.1754944e-38, %v1496
    %v1498 = vsel %vm1495, %v1497, %v1493
    %v1499 = vmul.f32 1.0, %v1498
    %v1500 = vrcp.pop %v1202
    %v1501 = vmul.f32 %v1202, %v1500
    %v1502 = vsub.f32 1.0, %v1501
    %v1503 = vmul.f32 %v1500, %v1502
    %v1504 = vadd.f32 %v1500, %v1503
    %vm1505 = vweird.f32 %v1202
    %vm1506 = vweird.f32 %v1500
    %vm1507 = vmor %vm1505, %vm1506
    %v1508 = vsel %vm1507, %v1500, %v1504
    %v1509 = vand.u32 2147483647, %v1202
    %vm1510 = vcmp.eq.f32.partialorder %v1509, 8.507059e+37
    %v1511 = vand.u32 %v1202, 2147483648
    %v1512 = vor.u32 1.1754944e-38, %v1511
    %v1513 = vsel %vm1510, %v1512, %v1508
    %v1514 = vmul.f32 1.0, %v1513
    %v1515 = vrcp.pop %v1203
    %v1516 = vmul.f32 %v1203, %v1515
    %v1517 = vsub.f32 1.0, %v1516
    %v1518 = vmul.f32 %v1515, %v1517
    %v1519 = vadd.f32 %v1515, %v1518
    %vm1520 = vweird.f32 %v1203
    %vm1521 = vweird.f32 %v1515
    %vm1522 = vmor %vm1520, %vm1521
    %v1523 = vsel %vm1522, %v1515, %v1519
    %v1524 = vand.u32 2147483647, %v1203
    %vm1525 = vcmp.eq.f32.partialorder %v1524, 8.507059e+37
    %v1526 = vand.u32 %v1203, 2147483648
    %v1527 = vor.u32 1.1754944e-38, %v1526
    %v1528 = vsel %vm1525, %v1527, %v1523
    %v1529 = vmul.f32 1.0, %v1528
    %v1530 = vrcp.pop %v1204
    %v1531 = vmul.f32 %v1204, %v1530
    %v1532 = vsub.f32 1.0, %v1531
    %v1533 = vmul.f32 %v1530, %v1532
    %v1534 = vadd.f32 %v1530, %v1533
    %vm1535 = vweird.f32 %v1204
    %vm1536 = vweird.f32 %v1530
    %vm1537 = vmor %vm1535, %vm1536
    %v1538 = vsel %vm1537, %v1530, %v1534
    %v1539 = vand.u32 2147483647, %v1204
    %vm1540 = vcmp.eq.f32.partialorder %v1539, 8.507059e+37
    %v1541 = vand.u32 %v1204, 2147483648
    %v1542 = vor.u32 1.1754944e-38, %v1541
    %v1543 = vsel %vm1540, %v1542, %v1538
    %v1544 = vmul.f32 1.0, %v1543
    %v1545 = vrcp.pop %v1205
    %v1546 = vmul.f32 %v1205, %v1545
    %v1547 = vsub.f32 1.0, %v1546
    %v1548 = vmul.f32 %v1545, %v1547
    %v1549 = vadd.f32 %v1545, %v1548
    %vm1550 = vweird.f32 %v1205
    %vm1551 = vweird.f32 %v1545
    %vm1552 = vmor %vm1550, %vm1551
    %v1553 = vsel %vm1552, %v1545, %v1549
    %v1554 = vand.u32 2147483647, %v1205
    %vm1555 = vcmp.eq.f32.partialorder %v1554, 8.507059e+37
    %v1556 = vand.u32 %v1205, 2147483648
    %v1557 = vor.u32 1.1754944e-38, %v1556
    %v1558 = vsel %vm1555, %v1557, %v1553
    %v1559 = vmul.f32 1.0, %v1558
    %v1560 = vrcp.pop %v1206
    %v1561 = vmul.f32 %v1206, %v1560
    %v1562 = vsub.f32 1.0, %v1561
    %v1563 = vmul.f32 %v1560, %v1562
    %v1564 = vadd.f32 %v1560, %v1563
    %vm1565 = vweird.f32 %v1206
    %vm1566 = vweird.f32 %v1560
    %vm1567 = vmor %vm1565, %vm1566
    %v1568 = vsel %vm1567, %v1560, %v1564
    %v1569 = vand.u32 2147483647, %v1206
    %vm1570 = vcmp.eq.f32.partialorder %v1569, 8.507059e+37
    %v1571 = vand.u32 %v1206, 2147483648
    %v1572 = vor.u32 1.1754944e-38, %v1571
    %v1573 = vsel %vm1570, %v1572, %v1568
    %v1574 = vmul.f32 1.0, %v1573
    %v1575 = vrcp.pop %v1207
    %v1576 = vmul.f32 %v1207, %v1575
    %v1577 = vsub.f32 1.0, %v1576
    %v1578 = vmul.f32 %v1575, %v1577
    %v1579 = vadd.f32 %v1575, %v1578
    %vm1580 = vweird.f32 %v1207
    %vm1581 = vweird.f32 %v1575
    %vm1582 = vmor %vm1580, %vm1581
    %v1583 = vsel %vm1582, %v1575, %v1579
    %v1584 = vand.u32 2147483647, %v1207
    %vm1585 = vcmp.eq.f32.partialorder %v1584, 8.507059e+37
    %v1586 = vand.u32 %v1207, 2147483648
    %v1587 = vor.u32 1.1754944e-38, %v1586
    %v1588 = vsel %vm1585, %v1587, %v1583
    %v1589 = vmul.f32 1.0, %v1588
    %v1590 = vrcp.pop %v1208
    %v1591 = vmul.f32 %v1208, %v1590
    %v1592 = vsub.f32 1.0, %v1591
    %v1593 = vmul.f32 %v1590, %v1592
    %v1594 = vadd.f32 %v1590, %v1593
    %vm1595 = vweird.f32 %v1208
    %vm1596 = vweird.f32 %v1590
    %vm1597 = vmor %vm1595, %vm1596
    %v1598 = vsel %vm1597, %v1590, %v1594
    %v1599 = vand.u32 2147483647, %v1208
    %vm1600 = vcmp.eq.f32.partialorder %v1599, 8.507059e+37
    %v1601 = vand.u32 %v1208, 2147483648
    %v1602 = vor.u32 1.1754944e-38, %v1601
    %v1603 = vsel %vm1600, %v1602, %v1598
    %v1604 = vmul.f32 1.0, %v1603
    %v1605 = vrcp.pop %v1209
    %v1606 = vmul.f32 %v1209, %v1605
    %v1607 = vsub.f32 1.0, %v1606
    %v1608 = vmul.f32 %v1605, %v1607
    %v1609 = vadd.f32 %v1605, %v1608
    %vm1610 = vweird.f32 %v1209
    %vm1611 = vweird.f32 %v1605
    %vm1612 = vmor %vm1610, %vm1611
    %v1613 = vsel %vm1612, %v1605, %v1609
    %v1614 = vand.u32 2147483647, %v1209
    %vm1615 = vcmp.eq.f32.partialorder %v1614, 8.507059e+37
    %v1616 = vand.u32 %v1209, 2147483648
    %v1617 = vor.u32 1.1754944e-38, %v1616
    %v1618 = vsel %vm1615, %v1617, %v1613
    %v1619 = vmul.f32 1.0, %v1618
    %v1620 = vrcp.pop %v1210
    %v1621 = vmul.f32 %v1210, %v1620
    %v1622 = vsub.f32 1.0, %v1621
    %v1623 = vmul.f32 %v1620, %v1622
    %v1624 = vadd.f32 %v1620, %v1623
    %vm1625 = vweird.f32 %v1210
    %vm1626 = vweird.f32 %v1620
    %vm1627 = vmor %vm1625, %vm1626
    %v1628 = vsel %vm1627, %v1620, %v1624
    %v1629 = vand.u32 2147483647, %v1210
    %vm1630 = vcmp.eq.f32.partialorder %v1629, 8.507059e+37
    %v1631 = vand.u32 %v1210, 2147483648
    %v1632 = vor.u32 1.1754944e-38, %v1631
    %v1633 = vsel %vm1630, %v1632, %v1628
    %v1634 = vmul.f32 1.0, %v1633
    %v1635 = vrcp.pop %v1211
    %v1636 = vmul.f32 %v1211, %v1635
    %v1637 = vsub.f32 1.0, %v1636
    %v1638 = vmul.f32 %v1635, %v1637
    %v1639 = vadd.f32 %v1635, %v1638
    %vm1640 = vweird.f32 %v1211
    %vm1641 = vweird.f32 %v1635
    %vm1642 = vmor %vm1640, %vm1641
    %v1643 = vsel %vm1642, %v1635, %v1639
    %v1644 = vand.u32 2147483647, %v1211
    %vm1645 = vcmp.eq.f32.partialorder %v1644, 8.507059e+37
    %v1646 = vand.u32 %v1211, 2147483648
    %v1647 = vor.u32 1.1754944e-38, %v1646
    %v1648 = vsel %vm1645, %v1647, %v1643
    %v1649 = vmul.f32 1.0, %v1648
    %v1650 = vrcp.pop %v1212
    %v1651 = vmul.f32 %v1212, %v1650
    %v1652 = vsub.f32 1.0, %v1651
    %v1653 = vmul.f32 %v1650, %v1652
    %v1654 = vadd.f32 %v1650, %v1653
    %vm1655 = vweird.f32 %v1212
    %vm1656 = vweird.f32 %v1650
    %vm1657 = vmor %vm1655, %vm1656
    %v1658 = vsel %vm1657, %v1650, %v1654
    %v1659 = vand.u32 2147483647, %v1212
    %vm1660 = vcmp.eq.f32.partialorder %v1659, 8.507059e+37
    %v1661 = vand.u32 %v1212, 2147483648
    %v1662 = vor.u32 1.1754944e-38, %v1661
    %v1663 = vsel %vm1660, %v1662, %v1658
    %v1664 = vmul.f32 1.0, %v1663
    %v1665 = vrcp.pop %v1213
    %v1666 = vmul.f32 %v1213, %v1665
    %v1667 = vsub.f32 1.0, %v1666
    %v1668 = vmul.f32 %v1665, %v1667
    %v1669 = vadd.f32 %v1665, %v1668
    %vm1670 = vweird.f32 %v1213
    %vm1671 = vweird.f32 %v1665
    %vm1672 = vmor %vm1670, %vm1671
    %v1673 = vsel %vm1672, %v1665, %v1669
    %v1674 = vand.u32 2147483647, %v1213
    %vm1675 = vcmp.eq.f32.partialorder %v1674, 8.507059e+37
    %v1676 = vand.u32 %v1213, 2147483648
    %v1677 = vor.u32 1.1754944e-38, %v1676
    %v1678 = vsel %vm1675, %v1677, %v1673
    %v1679 = vmul.f32 1.0, %v1678
    %v1680 = vrcp.pop %v1214
    %v1681 = vmul.f32 %v1214, %v1680
    %v1682 = vsub.f32 1.0, %v1681
    %v1683 = vmul.f32 %v1680, %v1682
    %v1684 = vadd.f32 %v1680, %v1683
    %vm1685 = vweird.f32 %v1214
    %vm1686 = vweird.f32 %v1680
    %vm1687 = vmor %vm1685, %vm1686
    %v1688 = vsel %vm1687, %v1680, %v1684
    %v1689 = vand.u32 2147483647, %v1214
    %vm1690 = vcmp.eq.f32.partialorder %v1689, 8.507059e+37
    %v1691 = vand.u32 %v1214, 2147483648
    %v1692 = vor.u32 1.1754944e-38, %v1691
    %v1693 = vsel %vm1690, %v1692, %v1688
    %v1694 = vmul.f32 1.0, %v1693
    %v1695 = vpack.c.bf16 %v1244, %v1229
    %v1696 = vpack.c.bf16 %v1274, %v1259
    %v1697 = vpack.c.bf16 %v1304, %v1289
    %v1698 = vpack.c.bf16 %v1334, %v1319
    %v1699 = vpack.c.bf16 %v1364, %v1349
    %v1700 = vpack.c.bf16 %v1394, %v1379
    %v1701 = vpack.c.bf16 %v1424, %v1409
    %v1702 = vpack.c.bf16 %v1454, %v1439
    %v1703 = vpack.c.bf16 %v1484, %v1469
    %v1704 = vpack.c.bf16 %v1514, %v1499
    %v1705 = vpack.c.bf16 %v1544, %v1529
    %v1706 = vpack.c.bf16 %v1574, %v1559
    %v1707 = vpack.c.bf16 %v1604, %v1589
    %v1708 = vpack.c.bf16 %v1634, %v1619
    %v1709 = vpack.c.bf16 %v1664, %v1649
    %v1710 = vpack.c.bf16 %v1694, %v1679
    %v1711 = vld [vmem:[%s7] sm:$0xf]
    %v1712 = vld [vmem:[%s7 + $0x4] sm:$0xf]
    %v1713 = vld [vmem:[%s7 + $0x8] sm:$0xf]
    %v1714 = vld [vmem:[%s7 + $0xc] sm:$0xf]
    %v1719 = vunpack.c.l.b16 %v1711
    %v1720 = vunpack.c.l.b16 %v1712
    %v1721 = vunpack.c.l.b16 %v1713
    %v1722 = vunpack.c.l.b16 %v1714
    %v1723 = vpack.c.b16 %v1720, %v1719
    %v1724 = vpack.c.b16 %v1722, %v1721
    %vm1727 = vcmask 261120
    %v1729 = vsel %vm1727, %v1695, 0
    %v1732 = vsel %vm1727, %v1696, 0
    %v1735 = vsel %vm1727, %v1697, 0
    %v1738 = vsel %vm1727, %v1698, 0
    %v1741 = vsel %vm1727, %v1699, 0
    %v1744 = vsel %vm1727, %v1700, 0
    %v1747 = vsel %vm1727, %v1701, 0
    %v1750 = vsel %vm1727, %v1702, 0
    %v1753 = vsel %vm1727, %v1703, 0
    %v1756 = vsel %vm1727, %v1704, 0
    %v1759 = vsel %vm1727, %v1705, 0
    %v1762 = vsel %vm1727, %v1706, 0
    %v1765 = vsel %vm1727, %v1707, 0
    %v1768 = vsel %vm1727, %v1708, 0
    %v1771 = vsel %vm1727, %v1709, 0
    %v1774 = vsel %vm1727, %v1710, 0
    %1776 = vmatpush.bf16.msra.mxu0 0
    %1777 = vmatpush.bf16.msra.mxu0 0
    %1778 = vmatpush.bf16.msra.mxu0 0
    %1779 = vmatpush.bf16.msra.mxu0 0
    %1780 = vmatpush.bf16.msra.mxu0 0
    %1781 = vmatpush.bf16.msra.mxu0 0
    %1782 = vmatpush.bf16.msra.mxu0 %v1724
    %1783 = vmatpush.bf16.msra.mxu0 %v1723
    %1784 = vmatmul.bf16.gmra.mxu0 %v1729
    %v1785 = vpop.f32.mrf.mxu0
    %v1786 = vadd.f32 0.0, %v1785
    %v1787 = vpop.f32.mrf.mxu0
    %v1788 = vadd.f32 0.0, %v1787
    %1789 = vmatmul.bf16.gmra.mxu0 %v1732
    %v1790 = vpop.f32.mrf.mxu0
    %v1791 = vadd.f32 0.0, %v1790
    %v1792 = vpop.f32.mrf.mxu0
    %v1793 = vadd.f32 0.0, %v1792
    %1794 = vmatmul.bf16.gmra.mxu0 %v1735
    %v1795 = vpop.f32.mrf.mxu0
    %v1796 = vadd.f32 0.0, %v1795
    %v1797 = vpop.f32.mrf.mxu0
    %v1798 = vadd.f32 0.0, %v1797
    %1799 = vmatmul.bf16.gmra.mxu0 %v1738
    %v1800 = vpop.f32.mrf.mxu0
    %v1801 = vadd.f32 0.0, %v1800
    %v1802 = vpop.f32.mrf.mxu0
    %v1803 = vadd.f32 0.0, %v1802
    %1804 = vmatmul.bf16.gmra.mxu0 %v1741
    %v1805 = vpop.f32.mrf.mxu0
    %v1806 = vadd.f32 0.0, %v1805
    %v1807 = vpop.f32.mrf.mxu0
    %v1808 = vadd.f32 0.0, %v1807
    %1809 = vmatmul.bf16.gmra.mxu0 %v1744
    %v1810 = vpop.f32.mrf.mxu0
    %v1811 = vadd.f32 0.0, %v1810
    %v1812 = vpop.f32.mrf.mxu0
    %v1813 = vadd.f32 0.0, %v1812
    %1814 = vmatmul.bf16.gmra.mxu0 %v1747
    %v1815 = vpop.f32.mrf.mxu0
    %v1816 = vadd.f32 0.0, %v1815
    %v1817 = vpop.f32.mrf.mxu0
    %v1818 = vadd.f32 0.0, %v1817
    %1819 = vmatmul.bf16.gmra.mxu0 %v1750
    %v1820 = vpop.f32.mrf.mxu0
    %v1821 = vadd.f32 0.0, %v1820
    %v1822 = vpop.f32.mrf.mxu0
    %v1823 = vadd.f32 0.0, %v1822
    %1824 = vmatmul.bf16.gmra.mxu0 %v1753
    %v1825 = vpop.f32.mrf.mxu0
    %v1826 = vadd.f32 0.0, %v1825
    %v1827 = vpop.f32.mrf.mxu0
    %v1828 = vadd.f32 0.0, %v1827
    %1829 = vmatmul.bf16.gmra.mxu0 %v1756
    %v1830 = vpop.f32.mrf.mxu0
    %v1831 = vadd.f32 0.0, %v1830
    %v1832 = vpop.f32.mrf.mxu0
    %v1833 = vadd.f32 0.0, %v1832
    %1834 = vmatmul.bf16.gmra.mxu0 %v1759
    %v1835 = vpop.f32.mrf.mxu0
    %v1836 = vadd.f32 0.0, %v1835
    %v1837 = vpop.f32.mrf.mxu0
    %v1838 = vadd.f32 0.0, %v1837
    %1839 = vmatmul.bf16.gmra.mxu0 %v1762
    %v1840 = vpop.f32.mrf.mxu0
    %v1841 = vadd.f32 0.0, %v1840
    %v1842 = vpop.f32.mrf.mxu0
    %v1843 = vadd.f32 0.0, %v1842
    %1844 = vmatmul.bf16.gmra.mxu0 %v1765
    %v1845 = vpop.f32.mrf.mxu0
    %v1846 = vadd.f32 0.0, %v1845
    %v1847 = vpop.f32.mrf.mxu0
    %v1848 = vadd.f32 0.0, %v1847
    %1849 = vmatmul.bf16.gmra.mxu0 %v1768
    %v1850 = vpop.f32.mrf.mxu0
    %v1851 = vadd.f32 0.0, %v1850
    %v1852 = vpop.f32.mrf.mxu0
    %v1853 = vadd.f32 0.0, %v1852
    %1854 = vmatmul.bf16.gmra.mxu0 %v1771
    %v1855 = vpop.f32.mrf.mxu0
    %v1856 = vadd.f32 0.0, %v1855
    %v1857 = vpop.f32.mrf.mxu0
    %v1858 = vadd.f32 0.0, %v1857
    %1859 = vmatmul.bf16.gmra.mxu0 %v1774
    %v1860 = vpop.f32.mrf.mxu0
    %v1861 = vadd.f32 0.0, %v1860
    %v1862 = vpop.f32.mrf.mxu0
    %v1863 = vadd.f32 0.0, %v1862
    %1864 = vdwg.mxu0
    %1865 = vst [vmem:[#allocation2] sm:$0xff] %v1786
    %1866 = vst [vmem:[#allocation2 + $0x8] sm:$0xff] %v1788
    %1867 = vst [vmem:[#allocation2 + $0x10] sm:$0xff] %v1791
    %1868 = vst [vmem:[#allocation2 + $0x18] sm:$0xff] %v1793
    %1869 = vst [vmem:[#allocation2 + $0x20] sm:$0xff] %v1796
    %1870 = vst [vmem:[#allocation2 + $0x28] sm:$0xff] %v1798
    %1871 = vst [vmem:[#allocation2 + $0x30] sm:$0xff] %v1801
    %1872 = vst [vmem:[#allocation2 + $0x38] sm:$0xff] %v1803
    %1873 = vst [vmem:[#allocation2 + $0x40] sm:$0xff] %v1806
    %1874 = vst [vmem:[#allocation2 + $0x48] sm:$0xff] %v1808
    %1875 = vst [vmem:[#allocation2 + $0x50] sm:$0xff] %v1811
    %1876 = vst [vmem:[#allocation2 + $0x58] sm:$0xff] %v1813
    %1877 = vst [vmem:[#allocation2 + $0x60] sm:$0xff] %v1816
    %1878 = vst [vmem:[#allocation2 + $0x68] sm:$0xff] %v1818
    %1879 = vst [vmem:[#allocation2 + $0x70] sm:$0xff] %v1821
    %1880 = vst [vmem:[#allocation2 + $0x78] sm:$0xff] %v1823
    %1881 = vst [vmem:[#allocation2 + $0x80] sm:$0xff] %v1826
    %1882 = vst [vmem:[#allocation2 + $0x88] sm:$0xff] %v1828
    %1883 = vst [vmem:[#allocation2 + $0x90] sm:$0xff] %v1831
    %1884 = vst [vmem:[#allocation2 + $0x98] sm:$0xff] %v1833
    %1885 = vst [vmem:[#allocation2 + $0xa0] sm:$0xff] %v1836
    %1886 = vst [vmem:[#allocation2 + $0xa8] sm:$0xff] %v1838
    %1887 = vst [vmem:[#allocation2 + $0xb0] sm:$0xff] %v1841
    %1888 = vst [vmem:[#allocation2 + $0xb8] sm:$0xff] %v1843
    %1889 = vst [vmem:[#allocation2 + $0xc0] sm:$0xff] %v1846
    %1890 = vst [vmem:[#allocation2 + $0xc8] sm:$0xff] %v1848
    %1891 = vst [vmem:[#allocation2 + $0xd0] sm:$0xff] %v1851
    %1892 = vst [vmem:[#allocation2 + $0xd8] sm:$0xff] %v1853
    %1893 = vst [vmem:[#allocation2 + $0xe0] sm:$0xff] %v1856
    %1894 = vst [vmem:[#allocation2 + $0xe8] sm:$0xff] %v1858
    %1895 = vst [vmem:[#allocation2 + $0xf0] sm:$0xff] %v1861
    %1896 = vst [vmem:[#allocation2 + $0xf8] sm:$0xff] %v1863
    // Predicated region
    $region34: #{tpu_custom_call.1} parent=1 // pred_check
      _
    $region35: #{tpu_custom_call.1} parent=1 // pred_check_branch
      %1898 = sbr.rel (0) target = $region37
    $region36: #{tpu_custom_call.1} parent=1 // pred_region
      %1900 = vsyncadd [#allocation3], 0
      %s1901 = sshll.u32 [#allocation2], 4
      %s1902 = int_to_ptr.vmem [resolvable:$true] %s1901
      %s1903 = sshll.u32 %s8, 4
      %s1904 = int_to_ptr.hbm [resolvable:$true] %s1903
      %1909 = dma.vmem_to_hbm [thread:$0]  %s1902, 4096, %s1904, [#allocation3], 128, 128, 8
    $region37: #{tpu_custom_call.1} parent=1 // pred_fallthru
      _
    // Predicated region
    $region38: #{tpu_custom_call.1} parent=1 // pred_check
      _
    $region39: #{tpu_custom_call.1} parent=1 // pred_check_branch
      %1911 = sbr.rel (0) target = $region41
    $region40: #{tpu_custom_call.1} parent=1 // pred_region
      %1913 = dma.done [#allocation3], 4096
    $region41: #{tpu_custom_call.1} parent=1 // pred_fallthru
      _
    %1914 = vsyncpa [#allocation3], 1

</llo_original>
